<compile_context>
chip_gen: v5e
topology: v5e:2x2
jax: 0.10.0
libtpu: 0.0.40
codegen_flags: <defaults>
</compile_context>

<pallas_src>
import functools

import jax
import jax.numpy as jnp
from jax.experimental import pallas as pl
from jax.experimental.pallas import tpu as pltpu  # noqa: F401  (TPU backend)

# ----------------------------- config -----------------------------
VOCAB = 100
MAX_POS = 32
H = 64            # hidden size            (bert-base: 768)
NH = 2            # attention heads        (bert-base: 12)
HD = H // NH      # head dim
INTER = 128       # FFN intermediate       (bert-base: 3072)
LAYERS = 2        # transformer layers     (bert-base: 12)
CLS_HID = 32      # classifier hidden      (module: 256)
NUM_CLASSES = 12  # len(task_idx_2_type) for TEACh task types
LOGIT_PAD = 128   # lane-dense padded logits width
LN_EPS = 1e-12


# ----------------------------- in-kernel helpers -----------------------------
def _layernorm(x, g, b):
    mu = jnp.mean(x, axis=-1, keepdims=True)
    xc = x - mu
    var = jnp.mean(xc * xc, axis=-1, keepdims=True)
    return xc * jax.lax.rsqrt(var + LN_EPS) * g + b


def _softmax_lastdim(s):
    m = jnp.max(s, axis=-1, keepdims=True)
    p = jnp.exp(s - m)
    denom = jnp.sum(p, axis=-1, keepdims=True)
    return p * pl.reciprocal(denom, approx=True)


# ----------------------------- fused kernel -----------------------------
def _fused_model_kernel(
    x_ref,                              # (B*S, H)   word + pos + type embedding sum
    emb_g_ref, emb_b_ref,               # (1, H)
    wqkv_ref, bqkv_ref,                 # (L, H, 3H), (L, 1, 3H)
    wo_ref, bo_ref,                     # (L, H, H),  (L, 1, H)
    ln1_g_ref, ln1_b_ref,               # (L, 1, H)
    wi_ref, bi_ref,                     # (L, H, INTER), (L, 1, INTER)
    wf_ref, bf_ref,                     # (L, INTER, H), (L, 1, H)
    ln2_g_ref, ln2_b_ref,               # (L, 1, H)
    pool_w_ref, pool_b_ref,             # (H, H), (1, H)
    cls_w1_ref, cls_b1_ref,             # (H, CLS_HID), (1, CLS_HID)
    cls_w2_ref, cls_b2_ref,             # (CLS_HID, LOGIT_PAD), (1, LOGIT_PAD)
    o_ref,                              # (B, LOGIT_PAD)
    *, batch, seq,
):
    scale = 1.0 / float(HD) ** 0.5

    # BertEmbeddings LayerNorm (sum was formed in the wrapper; gather is glue).
    h = _layernorm(x_ref[...], emb_g_ref[...], emb_b_ref[...])          # (B*S, H)

    for li in range(LAYERS):
        # --- self-attention, fused QKV projection (lane-dense 3H output) ---
        qkv = jnp.dot(h, wqkv_ref[li], preferred_element_type=jnp.float32) + bqkv_ref[li]

        ctx_heads = []
        for hi in range(NH):  # static unrolled head loop, all in VMEM
            q_h = qkv[:, hi * HD:(hi + 1) * HD].reshape(batch, seq, HD)
            k_h = qkv[:, H + hi * HD:H + (hi + 1) * HD].reshape(batch, seq, HD)
            v_h = qkv[:, 2 * H + hi * HD:2 * H + (hi + 1) * HD].reshape(batch, seq, HD)
            s = jnp.einsum('bqd,bkd->bqk', q_h, k_h,
                           preferred_element_type=jnp.float32) * scale
            p = _softmax_lastdim(s)                                      # (B, S, S)
            ctx_h = jnp.einsum('bqk,bkd->bqd', p, v_h,
                               preferred_element_type=jnp.float32)
            ctx_heads.append(ctx_h.reshape(batch * seq, HD))
        ctx = jnp.concatenate(ctx_heads, axis=-1)                        # (B*S, H)

        attn_out = jnp.dot(ctx, wo_ref[li], preferred_element_type=jnp.float32) + bo_ref[li]
        h = _layernorm(attn_out + h, ln1_g_ref[li], ln1_b_ref[li])

        # --- feed-forward ---
        inter = jnp.dot(h, wi_ref[li], preferred_element_type=jnp.float32) + bi_ref[li]
        # TODO(synk): HF/PyTorch BERT default 'gelu' is the exact erf form; tanh
        # approximation used here (differs at ~1e-3 level).
        inter = jax.nn.gelu(inter, approximate=True)
        ffn_out = jnp.dot(inter, wf_ref[li], preferred_element_type=jnp.float32) + bf_ref[li]
        h = _layernorm(ffn_out + h, ln2_g_ref[li], ln2_b_ref[li])

    # BertPooler: first ([CLS]) token -> dense + tanh
    h3 = h.reshape(batch, seq, H)
    cls_tok = h3[:, 0, :]                                                # (B, H)
    pooled = jnp.tanh(
        jnp.dot(cls_tok, pool_w_ref[...], preferred_element_type=jnp.float32)
        + pool_b_ref[...])

    # classifier_1 = Linear -> ReLU -> Linear (final weight padded to 128 lanes)
    hid = jnp.maximum(
        jnp.dot(pooled, cls_w1_ref[...], preferred_element_type=jnp.float32)
        + cls_b1_ref[...], 0.0)
    logits = (jnp.dot(hid, cls_w2_ref[...], preferred_element_type=jnp.float32)
              + cls_b2_ref[...])
    o_ref[...] = logits.astype(o_ref.dtype)                              # (B, 128) lane-dense


# ----------------------------- params -----------------------------
def init_params(key):
    ks = jax.random.split(key, 10)

    def rnd(k, shape):
        return jax.random.normal(k, shape, jnp.float32) * 0.02

    p = {}
    p["word_emb"] = rnd(ks[0], (VOCAB, H))
    p["pos_emb"] = rnd(ks[1], (MAX_POS, H))
    p["type_emb"] = rnd(ks[2], (2, H))
    p["emb_ln_g"] = jnp.ones((1, H), jnp.float32)
    p["emb_ln_b"] = jnp.zeros((1, H), jnp.float32)

    # Stacked per-layer weights; Q|K|V fused into one (H, 3H) projection.
    p["wqkv"] = rnd(ks[3], (LAYERS, H, 3 * H))
    p["bqkv"] = jnp.zeros((LAYERS, 1, 3 * H), jnp.float32)
    p["wo"] = rnd(ks[4], (LAYERS, H, H))
    p["bo"] = jnp.zeros((LAYERS, 1, H), jnp.float32)
    p["ln1_g"] = jnp.ones((LAYERS, 1, H), jnp.float32)
    p["ln1_b"] = jnp.zeros((LAYERS, 1, H), jnp.float32)
    p["wi"] = rnd(ks[5], (LAYERS, H, INTER))
    p["bi"] = jnp.zeros((LAYERS, 1, INTER), jnp.float32)
    p["wf"] = rnd(ks[6], (LAYERS, INTER, H))
    p["bf"] = jnp.zeros((LAYERS, 1, H), jnp.float32)
    p["ln2_g"] = jnp.ones((LAYERS, 1, H), jnp.float32)
    p["ln2_b"] = jnp.zeros((LAYERS, 1, H), jnp.float32)

    p["pool_w"] = rnd(ks[7], (H, H))
    p["pool_b"] = jnp.zeros((1, H), jnp.float32)
    p["cls_w1"] = rnd(ks[8], (H, CLS_HID))
    p["cls_b1"] = jnp.zeros((1, CLS_HID), jnp.float32)

    # Final classifier weight padded to 128 output lanes (extra columns are zero).
    w2 = rnd(ks[9], (CLS_HID, NUM_CLASSES))
    p["cls_w2_pad"] = jnp.zeros((CLS_HID, LOGIT_PAD), jnp.float32).at[:, :NUM_CLASSES].set(w2)
    p["cls_b2_pad"] = jnp.zeros((1, LOGIT_PAD), jnp.float32)
    return p


# ----------------------------- forward -----------------------------
def task_prediction_type(params, input_ids):
    """input_ids: (B, S) int32 token ids -> (B, NUM_CLASSES) float32 logits."""
    B, S = input_ids.shape

    # Embedding gathers / broadcasts stay in XLA (glue); everything after is one kernel.
    word = params["word_emb"][input_ids]                     # (B, S, H)
    pos = params["pos_emb"][:S][None, :, :]                  # (1, S, H)
    typ = params["type_emb"][0][None, None, :]               # (1, 1, H)
    x = (word + pos + typ).reshape(B * S, H).astype(jnp.float32)

    kern = functools.partial(_fused_model_kernel, batch=B, seq=S)
    logits_pad = pl.pallas_call(
        kern,
        out_shape=jax.ShapeDtypeStruct((B, LOGIT_PAD), jnp.float32),
    )(
        x,
        params["emb_ln_g"], params["emb_ln_b"],
        params["wqkv"], params["bqkv"],
        params["wo"], params["bo"],
        params["ln1_g"], params["ln1_b"],
        params["wi"], params["bi"],
        params["wf"], params["bf"],
        params["ln2_g"], params["ln2_b"],
        params["pool_w"], params["pool_b"],
        params["cls_w1"], params["cls_b1"],
        params["cls_w2_pad"], params["cls_b2_pad"],
    )
    return logits_pad[:, :NUM_CLASSES]


# ----------------------------- main -----------------------------
if __name__ == "__main__":
    key = jax.random.PRNGKey(0)
    k_params, k_ids = jax.random.split(key)

    params = init_params(k_params)

    B, S = 2, 8
    input_ids = jax.random.randint(k_ids, (B, S), 0, VOCAB, dtype=jnp.int32)

    fwd = jax.jit(task_prediction_type)
    logits = fwd(params, input_ids)
    logits = jax.block_until_ready(logits)

    assert logits.shape == (B, NUM_CLASSES)
    assert logits.dtype == jnp.float32
    assert bool(jnp.all(jnp.isfinite(logits)))
    print("KERNEL_OK")
</pallas_src>

<mosaic_0001>
module attributes {stable_mosaic.version = 11 : i64} {
  func.func @_fused_model_kernel(%arg0: memref<16x64xf32, #tpu.memory_space<vmem>>, %arg1: memref<1x64xf32, #tpu.memory_space<vmem>>, %arg2: memref<1x64xf32, #tpu.memory_space<vmem>>, %arg3: memref<2x64x192xf32, #tpu.memory_space<vmem>>, %arg4: memref<2x1x192xf32, #tpu.memory_space<vmem>>, %arg5: memref<2x64x64xf32, #tpu.memory_space<vmem>>, %arg6: memref<2x1x64xf32, #tpu.memory_space<vmem>>, %arg7: memref<2x1x64xf32, #tpu.memory_space<vmem>>, %arg8: memref<2x1x64xf32, #tpu.memory_space<vmem>>, %arg9: memref<2x64x128xf32, #tpu.memory_space<vmem>>, %arg10: memref<2x1x128xf32, #tpu.memory_space<vmem>>, %arg11: memref<2x128x64xf32, #tpu.memory_space<vmem>>, %arg12: memref<2x1x64xf32, #tpu.memory_space<vmem>>, %arg13: memref<2x1x64xf32, #tpu.memory_space<vmem>>, %arg14: memref<2x1x64xf32, #tpu.memory_space<vmem>>, %arg15: memref<64x64xf32, #tpu.memory_space<vmem>>, %arg16: memref<1x64xf32, #tpu.memory_space<vmem>>, %arg17: memref<64x32xf32, #tpu.memory_space<vmem>>, %arg18: memref<1x32xf32, #tpu.memory_space<vmem>>, %arg19: memref<32x128xf32, #tpu.memory_space<vmem>>, %arg20: memref<1x128xf32, #tpu.memory_space<vmem>>, %arg21: memref<2x128xf32, #tpu.memory_space<vmem>>) attributes {dimension_semantics = [], scalar_prefetch = 0 : i64, scratch_operands = 0 : i64, tpu.core_type = #tpu.core_type<tc>} {
    %c0 = arith.constant 0 : index
    %c0_0 = arith.constant 0 : index
    %0 = vector.load %arg0[%c0, %c0_0] : memref<16x64xf32, #tpu.memory_space<vmem>>, vector<16x64xf32>
    %c0_1 = arith.constant 0 : index
    %c0_2 = arith.constant 0 : index
    %1 = vector.load %arg1[%c0_1, %c0_2] : memref<1x64xf32, #tpu.memory_space<vmem>>, vector<1x64xf32>
    %c0_3 = arith.constant 0 : index
    %c0_4 = arith.constant 0 : index
    %2 = vector.load %arg2[%c0_3, %c0_4] : memref<1x64xf32, #tpu.memory_space<vmem>>, vector<1x64xf32>
    %cst = arith.constant dense<0.000000e+00> : vector<16xf32>
    %3 = vector.multi_reduction <add>, %0, %cst [1] : vector<16x64xf32> to vector<16xf32>
    %4 = vector.shape_cast %3 : vector<16xf32> to vector<16x1xf32>
    %cst_5 = arith.constant 6.400000e+01 : f32
    %5 = vector.broadcast %cst_5 : f32 to vector<16x1xf32>
    %6 = arith.divf %4, %5 : vector<16x1xf32>
    %7 = vector.broadcast %6 : vector<16x1xf32> to vector<16x64xf32>
    %8 = arith.subf %0, %7 : vector<16x64xf32>
    %9 = arith.mulf %8, %8 : vector<16x64xf32>
    %cst_6 = arith.constant dense<0.000000e+00> : vector<16xf32>
    %10 = vector.multi_reduction <add>, %9, %cst_6 [1] : vector<16x64xf32> to vector<16xf32>
    %11 = vector.shape_cast %10 : vector<16xf32> to vector<16x1xf32>
    %cst_7 = arith.constant 6.400000e+01 : f32
    %12 = vector.broadcast %cst_7 : f32 to vector<16x1xf32>
    %13 = arith.divf %11, %12 : vector<16x1xf32>
    %cst_8 = arith.constant 9.99999996E-13 : f32
    %14 = vector.broadcast %cst_8 : f32 to vector<16x1xf32>
    %15 = arith.addf %13, %14 : vector<16x1xf32>
    %16 = math.rsqrt %15 : vector<16x1xf32>
    %17 = vector.broadcast %16 : vector<16x1xf32> to vector<16x64xf32>
    %18 = arith.mulf %8, %17 : vector<16x64xf32>
    %19 = vector.broadcast %1 : vector<1x64xf32> to vector<16x64xf32>
    %20 = arith.mulf %18, %19 : vector<16x64xf32>
    %21 = vector.broadcast %2 : vector<1x64xf32> to vector<16x64xf32>
    %22 = arith.addf %20, %21 : vector<16x64xf32>
    %c0_9 = arith.constant 0 : index
    %c0_10 = arith.constant 0 : index
    %c0_11 = arith.constant 0 : index
    %23 = vector.load %arg3[%c0_9, %c0_10, %c0_11] : memref<2x64x192xf32, #tpu.memory_space<vmem>>, vector<1x64x192xf32>
    %24 = vector.shape_cast %23 : vector<1x64x192xf32> to vector<64x192xf32>
    %cst_12 = arith.constant dense<0.000000e+00> : vector<16x192xf32>
    %25 = tpu.matmul %22, %24, %cst_12 {dimension_numbers = #tpu.dot_dimension_numbers<[1], [0], [0], [1], [0, 0, 1, 1], [], []>} : vector<16x64xf32>, vector<64x192xf32>, vector<16x192xf32> -> vector<16x192xf32>
    %c0_13 = arith.constant 0 : index
    %c0_14 = arith.constant 0 : index
    %c0_15 = arith.constant 0 : index
    %26 = vector.load %arg4[%c0_13, %c0_14, %c0_15] : memref<2x1x192xf32, #tpu.memory_space<vmem>>, vector<1x1x192xf32>
    %27 = vector.shape_cast %26 : vector<1x1x192xf32> to vector<1x192xf32>
    %28 = vector.broadcast %27 : vector<1x192xf32> to vector<16x192xf32>
    %29 = arith.addf %25, %28 : vector<16x192xf32>
    %30 = vector.extract_strided_slice %29 {offsets = [0, 0], sizes = [16, 32], strides = [1, 1]} : vector<16x192xf32> to vector<16x32xf32>
    %31 = vector.shape_cast %30 : vector<16x32xf32> to vector<2x8x32xf32>
    %32 = vector.extract_strided_slice %29 {offsets = [0, 64], sizes = [16, 32], strides = [1, 1]} : vector<16x192xf32> to vector<16x32xf32>
    %33 = vector.shape_cast %32 : vector<16x32xf32> to vector<2x8x32xf32>
    %34 = vector.extract_strided_slice %29 {offsets = [0, 128], sizes = [16, 32], strides = [1, 1]} : vector<16x192xf32> to vector<16x32xf32>
    %35 = vector.shape_cast %34 : vector<16x32xf32> to vector<2x8x32xf32>
    "tpu.trace_start"() <{level = 10 : i32, message = "bqd,bkd->bqk"}> : () -> ()
    %cst_16 = arith.constant dense<0.000000e+00> : vector<2x8x8xf32>
    %36 = tpu.matmul %31, %33, %cst_16 {dimension_numbers = #tpu.dot_dimension_numbers<[2], [2], [1], [1], [0, 0, 0, 1, 1, 1], [0], [0]>} : vector<2x8x32xf32>, vector<2x8x32xf32>, vector<2x8x8xf32> -> vector<2x8x8xf32>
    "tpu.trace_stop"() : () -> ()
    %cst_17 = arith.constant 0.176776692 : f32
    %37 = vector.broadcast %cst_17 : f32 to vector<2x8x8xf32>
    %38 = arith.mulf %36, %37 : vector<2x8x8xf32>
    %cst_18 = arith.constant dense<0xFF800000> : vector<2x8xf32>
    %39 = vector.multi_reduction <maximumf>, %38, %cst_18 [2] : vector<2x8x8xf32> to vector<2x8xf32>
    %40 = vector.shape_cast %39 : vector<2x8xf32> to vector<2x8x1xf32>
    %41 = vector.broadcast %40 : vector<2x8x1xf32> to vector<2x8x8xf32>
    %42 = arith.subf %38, %41 : vector<2x8x8xf32>
    %43 = math.exp %42 : vector<2x8x8xf32>
    %cst_19 = arith.constant dense<0.000000e+00> : vector<2x8xf32>
    %44 = vector.multi_reduction <add>, %43, %cst_19 [2] : vector<2x8x8xf32> to vector<2x8xf32>
    %45 = vector.shape_cast %44 : vector<2x8xf32> to vector<2x8x1xf32>
    %46 = tpu.reciprocal %45 {approx = true} : vector<2x8x1xf32> -> vector<2x8x1xf32>
    %47 = vector.broadcast %46 : vector<2x8x1xf32> to vector<2x8x8xf32>
    %48 = arith.mulf %43, %47 : vector<2x8x8xf32>
    "tpu.trace_start"() <{level = 10 : i32, message = "bqk,bkd->bqd"}> : () -> ()
    %cst_20 = arith.constant dense<0.000000e+00> : vector<2x8x32xf32>
    %49 = tpu.matmul %48, %35, %cst_20 {dimension_numbers = #tpu.dot_dimension_numbers<[2], [1], [1], [2], [0, 0, 0, 1, 1, 2], [0], [0]>} : vector<2x8x8xf32>, vector<2x8x32xf32>, vector<2x8x32xf32> -> vector<2x8x32xf32>
    "tpu.trace_stop"() : () -> ()
    %50 = vector.shape_cast %49 : vector<2x8x32xf32> to vector<16x32xf32>
    %51 = vector.extract_strided_slice %29 {offsets = [0, 32], sizes = [16, 32], strides = [1, 1]} : vector<16x192xf32> to vector<16x32xf32>
    %52 = vector.shape_cast %51 : vector<16x32xf32> to vector<2x8x32xf32>
    %53 = vector.extract_strided_slice %29 {offsets = [0, 96], sizes = [16, 32], strides = [1, 1]} : vector<16x192xf32> to vector<16x32xf32>
    %54 = vector.shape_cast %53 : vector<16x32xf32> to vector<2x8x32xf32>
    %55 = vector.extract_strided_slice %29 {offsets = [0, 160], sizes = [16, 32], strides = [1, 1]} : vector<16x192xf32> to vector<16x32xf32>
    %56 = vector.shape_cast %55 : vector<16x32xf32> to vector<2x8x32xf32>
    "tpu.trace_start"() <{level = 10 : i32, message = "bqd,bkd->bqk"}> : () -> ()
    %cst_21 = arith.constant dense<0.000000e+00> : vector<2x8x8xf32>
    %57 = tpu.matmul %52, %54, %cst_21 {dimension_numbers = #tpu.dot_dimension_numbers<[2], [2], [1], [1], [0, 0, 0, 1, 1, 1], [0], [0]>} : vector<2x8x32xf32>, vector<2x8x32xf32>, vector<2x8x8xf32> -> vector<2x8x8xf32>
    "tpu.trace_stop"() : () -> ()
    %cst_22 = arith.constant 0.176776692 : f32
    %58 = vector.broadcast %cst_22 : f32 to vector<2x8x8xf32>
    %59 = arith.mulf %57, %58 : vector<2x8x8xf32>
    %cst_23 = arith.constant dense<0xFF800000> : vector<2x8xf32>
    %60 = vector.multi_reduction <maximumf>, %59, %cst_23 [2] : vector<2x8x8xf32> to vector<2x8xf32>
    %61 = vector.shape_cast %60 : vector<2x8xf32> to vector<2x8x1xf32>
    %62 = vector.broadcast %61 : vector<2x8x1xf32> to vector<2x8x8xf32>
    %63 = arith.subf %59, %62 : vector<2x8x8xf32>
    %64 = math.exp %63 : vector<2x8x8xf32>
    %cst_24 = arith.constant dense<0.000000e+00> : vector<2x8xf32>
    %65 = vector.multi_reduction <add>, %64, %cst_24 [2] : vector<2x8x8xf32> to vector<2x8xf32>
    %66 = vector.shape_cast %65 : vector<2x8xf32> to vector<2x8x1xf32>
    %67 = tpu.reciprocal %66 {approx = true} : vector<2x8x1xf32> -> vector<2x8x1xf32>
    %68 = vector.broadcast %67 : vector<2x8x1xf32> to vector<2x8x8xf32>
    %69 = arith.mulf %64, %68 : vector<2x8x8xf32>
    "tpu.trace_start"() <{level = 10 : i32, message = "bqk,bkd->bqd"}> : () -> ()
    %cst_25 = arith.constant dense<0.000000e+00> : vector<2x8x32xf32>
    %70 = tpu.matmul %69, %56, %cst_25 {dimension_numbers = #tpu.dot_dimension_numbers<[2], [1], [1], [2], [0, 0, 0, 1, 1, 2], [0], [0]>} : vector<2x8x8xf32>, vector<2x8x32xf32>, vector<2x8x32xf32> -> vector<2x8x32xf32>
    "tpu.trace_stop"() : () -> ()
    %71 = vector.shape_cast %70 : vector<2x8x32xf32> to vector<16x32xf32>
    %72 = tpu.concatenate %50, %71 in 1 : vector<16x32xf32>, vector<16x32xf32> -> vector<16x64xf32>
    %c0_26 = arith.constant 0 : index
    %c0_27 = arith.constant 0 : index
    %c0_28 = arith.constant 0 : index
    %73 = vector.load %arg5[%c0_26, %c0_27, %c0_28] : memref<2x64x64xf32, #tpu.memory_space<vmem>>, vector<1x64x64xf32>
    %74 = vector.shape_cast %73 : vector<1x64x64xf32> to vector<64x64xf32>
    %cst_29 = arith.constant dense<0.000000e+00> : vector<16x64xf32>
    %75 = tpu.matmul %72, %74, %cst_29 {dimension_numbers = #tpu.dot_dimension_numbers<[1], [0], [0], [1], [0, 0, 1, 1], [], []>} : vector<16x64xf32>, vector<64x64xf32>, vector<16x64xf32> -> vector<16x64xf32>
    %c0_30 = arith.constant 0 : index
    %c0_31 = arith.constant 0 : index
    %c0_32 = arith.constant 0 : index
    %76 = vector.load %arg6[%c0_30, %c0_31, %c0_32] : memref<2x1x64xf32, #tpu.memory_space<vmem>>, vector<1x1x64xf32>
    %77 = vector.shape_cast %76 : vector<1x1x64xf32> to vector<1x64xf32>
    %78 = vector.broadcast %77 : vector<1x64xf32> to vector<16x64xf32>
    %79 = arith.addf %75, %78 : vector<16x64xf32>
    %80 = arith.addf %79, %22 : vector<16x64xf32>
    %c0_33 = arith.constant 0 : index
    %c0_34 = arith.constant 0 : index
    %c0_35 = arith.constant 0 : index
    %81 = vector.load %arg7[%c0_33, %c0_34, %c0_35] : memref<2x1x64xf32, #tpu.memory_space<vmem>>, vector<1x1x64xf32>
    %82 = vector.shape_cast %81 : vector<1x1x64xf32> to vector<1x64xf32>
    %c0_36 = arith.constant 0 : index
    %c0_37 = arith.constant 0 : index
    %c0_38 = arith.constant 0 : index
    %83 = vector.load %arg8[%c0_36, %c0_37, %c0_38] : memref<2x1x64xf32, #tpu.memory_space<vmem>>, vector<1x1x64xf32>
    %84 = vector.shape_cast %83 : vector<1x1x64xf32> to vector<1x64xf32>
    %cst_39 = arith.constant dense<0.000000e+00> : vector<16xf32>
    %85 = vector.multi_reduction <add>, %80, %cst_39 [1] : vector<16x64xf32> to vector<16xf32>
    %86 = vector.shape_cast %85 : vector<16xf32> to vector<16x1xf32>
    %cst_40 = arith.constant 6.400000e+01 : f32
    %87 = vector.broadcast %cst_40 : f32 to vector<16x1xf32>
    %88 = arith.divf %86, %87 : vector<16x1xf32>
    %89 = vector.broadcast %88 : vector<16x1xf32> to vector<16x64xf32>
    %90 = arith.subf %80, %89 : vector<16x64xf32>
    %91 = arith.mulf %90, %90 : vector<16x64xf32>
    %cst_41 = arith.constant dense<0.000000e+00> : vector<16xf32>
    %92 = vector.multi_reduction <add>, %91, %cst_41 [1] : vector<16x64xf32> to vector<16xf32>
    %93 = vector.shape_cast %92 : vector<16xf32> to vector<16x1xf32>
    %cst_42 = arith.constant 6.400000e+01 : f32
    %94 = vector.broadcast %cst_42 : f32 to vector<16x1xf32>
    %95 = arith.divf %93, %94 : vector<16x1xf32>
    %cst_43 = arith.constant 9.99999996E-13 : f32
    %96 = vector.broadcast %cst_43 : f32 to vector<16x1xf32>
    %97 = arith.addf %95, %96 : vector<16x1xf32>
    %98 = math.rsqrt %97 : vector<16x1xf32>
    %99 = vector.broadcast %98 : vector<16x1xf32> to vector<16x64xf32>
    %100 = arith.mulf %90, %99 : vector<16x64xf32>
    %101 = vector.broadcast %82 : vector<1x64xf32> to vector<16x64xf32>
    %102 = arith.mulf %100, %101 : vector<16x64xf32>
    %103 = vector.broadcast %84 : vector<1x64xf32> to vector<16x64xf32>
    %104 = arith.addf %102, %103 : vector<16x64xf32>
    %c0_44 = arith.constant 0 : index
    %c0_45 = arith.constant 0 : index
    %c0_46 = arith.constant 0 : index
    %105 = vector.load %arg9[%c0_44, %c0_45, %c0_46] : memref<2x64x128xf32, #tpu.memory_space<vmem>>, vector<1x64x128xf32>
    %106 = vector.shape_cast %105 : vector<1x64x128xf32> to vector<64x128xf32>
    %cst_47 = arith.constant dense<0.000000e+00> : vector<16x128xf32>
    %107 = tpu.matmul %104, %106, %cst_47 {dimension_numbers = #tpu.dot_dimension_numbers<[1], [0], [0], [1], [0, 0, 1, 1], [], []>} : vector<16x64xf32>, vector<64x128xf32>, vector<16x128xf32> -> vector<16x128xf32>
    %c0_48 = arith.constant 0 : index
    %c0_49 = arith.constant 0 : index
    %c0_50 = arith.constant 0 : index
    %108 = vector.load %arg10[%c0_48, %c0_49, %c0_50] : memref<2x1x128xf32, #tpu.memory_space<vmem>>, vector<1x1x128xf32>
    %109 = vector.shape_cast %108 : vector<1x1x128xf32> to vector<1x128xf32>
    %110 = vector.broadcast %109 : vector<1x128xf32> to vector<16x128xf32>
    %111 = arith.addf %107, %110 : vector<16x128xf32>
    %112 = arith.mulf %111, %111 : vector<16x128xf32>
    %113 = arith.mulf %111, %112 : vector<16x128xf32>
    %cst_51 = arith.constant 4.471500e-02 : f32
    %114 = vector.broadcast %cst_51 : f32 to vector<16x128xf32>
    %115 = arith.mulf %114, %113 : vector<16x128xf32>
    %116 = arith.addf %111, %115 : vector<16x128xf32>
    %cst_52 = arith.constant 0.797884583 : f32
    %117 = vector.broadcast %cst_52 : f32 to vector<16x128xf32>
    %118 = arith.mulf %117, %116 : vector<16x128xf32>
    %119 = math.tanh %118 : vector<16x128xf32>
    %cst_53 = arith.constant 1.000000e+00 : f32
    %120 = vector.broadcast %cst_53 : f32 to vector<16x128xf32>
    %121 = arith.addf %120, %119 : vector<16x128xf32>
    %cst_54 = arith.constant 5.000000e-01 : f32
    %122 = vector.broadcast %cst_54 : f32 to vector<16x128xf32>
    %123 = arith.mulf %122, %121 : vector<16x128xf32>
    %124 = arith.mulf %111, %123 : vector<16x128xf32>
    %c0_55 = arith.constant 0 : index
    %c0_56 = arith.constant 0 : index
    %c0_57 = arith.constant 0 : index
    %125 = vector.load %arg11[%c0_55, %c0_56, %c0_57] : memref<2x128x64xf32, #tpu.memory_space<vmem>>, vector<1x128x64xf32>
    %126 = vector.shape_cast %125 : vector<1x128x64xf32> to vector<128x64xf32>
    %cst_58 = arith.constant dense<0.000000e+00> : vector<16x64xf32>
    %127 = tpu.matmul %124, %126, %cst_58 {dimension_numbers = #tpu.dot_dimension_numbers<[1], [0], [0], [1], [0, 0, 1, 1], [], []>} : vector<16x128xf32>, vector<128x64xf32>, vector<16x64xf32> -> vector<16x64xf32>
    %c0_59 = arith.constant 0 : index
    %c0_60 = arith.constant 0 : index
    %c0_61 = arith.constant 0 : index
    %128 = vector.load %arg12[%c0_59, %c0_60, %c0_61] : memref<2x1x64xf32, #tpu.memory_space<vmem>>, vector<1x1x64xf32>
    %129 = vector.shape_cast %128 : vector<1x1x64xf32> to vector<1x64xf32>
    %130 = vector.broadcast %129 : vector<1x64xf32> to vector<16x64xf32>
    %131 = arith.addf %127, %130 : vector<16x64xf32>
    %132 = arith.addf %131, %104 : vector<16x64xf32>
    %c0_62 = arith.constant 0 : index
    %c0_63 = arith.constant 0 : index
    %c0_64 = arith.constant 0 : index
    %133 = vector.load %arg13[%c0_62, %c0_63, %c0_64] : memref<2x1x64xf32, #tpu.memory_space<vmem>>, vector<1x1x64xf32>
    %134 = vector.shape_cast %133 : vector<1x1x64xf32> to vector<1x64xf32>
    %c0_65 = arith.constant 0 : index
    %c0_66 = arith.constant 0 : index
    %c0_67 = arith.constant 0 : index
    %135 = vector.load %arg14[%c0_65, %c0_66, %c0_67] : memref<2x1x64xf32, #tpu.memory_space<vmem>>, vector<1x1x64xf32>
    %136 = vector.shape_cast %135 : vector<1x1x64xf32> to vector<1x64xf32>
    %cst_68 = arith.constant dense<0.000000e+00> : vector<16xf32>
    %137 = vector.multi_reduction <add>, %132, %cst_68 [1] : vector<16x64xf32> to vector<16xf32>
    %138 = vector.shape_cast %137 : vector<16xf32> to vector<16x1xf32>
    %cst_69 = arith.constant 6.400000e+01 : f32
    %139 = vector.broadcast %cst_69 : f32 to vector<16x1xf32>
    %140 = arith.divf %138, %139 : vector<16x1xf32>
    %141 = vector.broadcast %140 : vector<16x1xf32> to vector<16x64xf32>
    %142 = arith.subf %132, %141 : vector<16x64xf32>
    %143 = arith.mulf %142, %142 : vector<16x64xf32>
    %cst_70 = arith.constant dense<0.000000e+00> : vector<16xf32>
    %144 = vector.multi_reduction <add>, %143, %cst_70 [1] : vector<16x64xf32> to vector<16xf32>
    %145 = vector.shape_cast %144 : vector<16xf32> to vector<16x1xf32>
    %cst_71 = arith.constant 6.400000e+01 : f32
    %146 = vector.broadcast %cst_71 : f32 to vector<16x1xf32>
    %147 = arith.divf %145, %146 : vector<16x1xf32>
    %cst_72 = arith.constant 9.99999996E-13 : f32
    %148 = vector.broadcast %cst_72 : f32 to vector<16x1xf32>
    %149 = arith.addf %147, %148 : vector<16x1xf32>
    %150 = math.rsqrt %149 : vector<16x1xf32>
    %151 = vector.broadcast %150 : vector<16x1xf32> to vector<16x64xf32>
    %152 = arith.mulf %142, %151 : vector<16x64xf32>
    %153 = vector.broadcast %134 : vector<1x64xf32> to vector<16x64xf32>
    %154 = arith.mulf %152, %153 : vector<16x64xf32>
    %155 = vector.broadcast %136 : vector<1x64xf32> to vector<16x64xf32>
    %156 = arith.addf %154, %155 : vector<16x64xf32>
    %c1 = arith.constant 1 : index
    %c0_73 = arith.constant 0 : index
    %c0_74 = arith.constant 0 : index
    %157 = vector.load %arg3[%c1, %c0_73, %c0_74] : memref<2x64x192xf32, #tpu.memory_space<vmem>>, vector<1x64x192xf32>
    %158 = vector.shape_cast %157 : vector<1x64x192xf32> to vector<64x192xf32>
    %cst_75 = arith.constant dense<0.000000e+00> : vector<16x192xf32>
    %159 = tpu.matmul %156, %158, %cst_75 {dimension_numbers = #tpu.dot_dimension_numbers<[1], [0], [0], [1], [0, 0, 1, 1], [], []>} : vector<16x64xf32>, vector<64x192xf32>, vector<16x192xf32> -> vector<16x192xf32>
    %c1_76 = arith.constant 1 : index
    %c0_77 = arith.constant 0 : index
    %c0_78 = arith.constant 0 : index
    %160 = vector.load %arg4[%c1_76, %c0_77, %c0_78] : memref<2x1x192xf32, #tpu.memory_space<vmem>>, vector<1x1x192xf32>
    %161 = vector.shape_cast %160 : vector<1x1x192xf32> to vector<1x192xf32>
    %162 = vector.broadcast %161 : vector<1x192xf32> to vector<16x192xf32>
    %163 = arith.addf %159, %162 : vector<16x192xf32>
    %164 = vector.extract_strided_slice %163 {offsets = [0, 0], sizes = [16, 32], strides = [1, 1]} : vector<16x192xf32> to vector<16x32xf32>
    %165 = vector.shape_cast %164 : vector<16x32xf32> to vector<2x8x32xf32>
    %166 = vector.extract_strided_slice %163 {offsets = [0, 64], sizes = [16, 32], strides = [1, 1]} : vector<16x192xf32> to vector<16x32xf32>
    %167 = vector.shape_cast %166 : vector<16x32xf32> to vector<2x8x32xf32>
    %168 = vector.extract_strided_slice %163 {offsets = [0, 128], sizes = [16, 32], strides = [1, 1]} : vector<16x192xf32> to vector<16x32xf32>
    %169 = vector.shape_cast %168 : vector<16x32xf32> to vector<2x8x32xf32>
    "tpu.trace_start"() <{level = 10 : i32, message = "bqd,bkd->bqk"}> : () -> ()
    %cst_79 = arith.constant dense<0.000000e+00> : vector<2x8x8xf32>
    %170 = tpu.matmul %165, %167, %cst_79 {dimension_numbers = #tpu.dot_dimension_numbers<[2], [2], [1], [1], [0, 0, 0, 1, 1, 1], [0], [0]>} : vector<2x8x32xf32>, vector<2x8x32xf32>, vector<2x8x8xf32> -> vector<2x8x8xf32>
    "tpu.trace_stop"() : () -> ()
    %cst_80 = arith.constant 0.176776692 : f32
    %171 = vector.broadcast %cst_80 : f32 to vector<2x8x8xf32>
    %172 = arith.mulf %170, %171 : vector<2x8x8xf32>
    %cst_81 = arith.constant dense<0xFF800000> : vector<2x8xf32>
    %173 = vector.multi_reduction <maximumf>, %172, %cst_81 [2] : vector<2x8x8xf32> to vector<2x8xf32>
    %174 = vector.shape_cast %173 : vector<2x8xf32> to vector<2x8x1xf32>
    %175 = vector.broadcast %174 : vector<2x8x1xf32> to vector<2x8x8xf32>
    %176 = arith.subf %172, %175 : vector<2x8x8xf32>
    %177 = math.exp %176 : vector<2x8x8xf32>
    %cst_82 = arith.constant dense<0.000000e+00> : vector<2x8xf32>
    %178 = vector.multi_reduction <add>, %177, %cst_82 [2] : vector<2x8x8xf32> to vector<2x8xf32>
    %179 = vector.shape_cast %178 : vector<2x8xf32> to vector<2x8x1xf32>
    %180 = tpu.reciprocal %179 {approx = true} : vector<2x8x1xf32> -> vector<2x8x1xf32>
    %181 = vector.broadcast %180 : vector<2x8x1xf32> to vector<2x8x8xf32>
    %182 = arith.mulf %177, %181 : vector<2x8x8xf32>
    "tpu.trace_start"() <{level = 10 : i32, message = "bqk,bkd->bqd"}> : () -> ()
    %cst_83 = arith.constant dense<0.000000e+00> : vector<2x8x32xf32>
    %183 = tpu.matmul %182, %169, %cst_83 {dimension_numbers = #tpu.dot_dimension_numbers<[2], [1], [1], [2], [0, 0, 0, 1, 1, 2], [0], [0]>} : vector<2x8x8xf32>, vector<2x8x32xf32>, vector<2x8x32xf32> -> vector<2x8x32xf32>
    "tpu.trace_stop"() : () -> ()
    %184 = vector.shape_cast %183 : vector<2x8x32xf32> to vector<16x32xf32>
    %185 = vector.extract_strided_slice %163 {offsets = [0, 32], sizes = [16, 32], strides = [1, 1]} : vector<16x192xf32> to vector<16x32xf32>
    %186 = vector.shape_cast %185 : vector<16x32xf32> to vector<2x8x32xf32>
    %187 = vector.extract_strided_slice %163 {offsets = [0, 96], sizes = [16, 32], strides = [1, 1]} : vector<16x192xf32> to vector<16x32xf32>
    %188 = vector.shape_cast %187 : vector<16x32xf32> to vector<2x8x32xf32>
    %189 = vector.extract_strided_slice %163 {offsets = [0, 160], sizes = [16, 32], strides = [1, 1]} : vector<16x192xf32> to vector<16x32xf32>
    %190 = vector.shape_cast %189 : vector<16x32xf32> to vector<2x8x32xf32>
    "tpu.trace_start"() <{level = 10 : i32, message = "bqd,bkd->bqk"}> : () -> ()
    %cst_84 = arith.constant dense<0.000000e+00> : vector<2x8x8xf32>
    %191 = tpu.matmul %186, %188, %cst_84 {dimension_numbers = #tpu.dot_dimension_numbers<[2], [2], [1], [1], [0, 0, 0, 1, 1, 1], [0], [0]>} : vector<2x8x32xf32>, vector<2x8x32xf32>, vector<2x8x8xf32> -> vector<2x8x8xf32>
    "tpu.trace_stop"() : () -> ()
    %cst_85 = arith.constant 0.176776692 : f32
    %192 = vector.broadcast %cst_85 : f32 to vector<2x8x8xf32>
    %193 = arith.mulf %191, %192 : vector<2x8x8xf32>
    %cst_86 = arith.constant dense<0xFF800000> : vector<2x8xf32>
    %194 = vector.multi_reduction <maximumf>, %193, %cst_86 [2] : vector<2x8x8xf32> to vector<2x8xf32>
    %195 = vector.shape_cast %194 : vector<2x8xf32> to vector<2x8x1xf32>
    %196 = vector.broadcast %195 : vector<2x8x1xf32> to vector<2x8x8xf32>
    %197 = arith.subf %193, %196 : vector<2x8x8xf32>
    %198 = math.exp %197 : vector<2x8x8xf32>
    %cst_87 = arith.constant dense<0.000000e+00> : vector<2x8xf32>
    %199 = vector.multi_reduction <add>, %198, %cst_87 [2] : vector<2x8x8xf32> to vector<2x8xf32>
    %200 = vector.shape_cast %199 : vector<2x8xf32> to vector<2x8x1xf32>
    %201 = tpu.reciprocal %200 {approx = true} : vector<2x8x1xf32> -> vector<2x8x1xf32>
    %202 = vector.broadcast %201 : vector<2x8x1xf32> to vector<2x8x8xf32>
    %203 = arith.mulf %198, %202 : vector<2x8x8xf32>
    "tpu.trace_start"() <{level = 10 : i32, message = "bqk,bkd->bqd"}> : () -> ()
    %cst_88 = arith.constant dense<0.000000e+00> : vector<2x8x32xf32>
    %204 = tpu.matmul %203, %190, %cst_88 {dimension_numbers = #tpu.dot_dimension_numbers<[2], [1], [1], [2], [0, 0, 0, 1, 1, 2], [0], [0]>} : vector<2x8x8xf32>, vector<2x8x32xf32>, vector<2x8x32xf32> -> vector<2x8x32xf32>
    "tpu.trace_stop"() : () -> ()
    %205 = vector.shape_cast %204 : vector<2x8x32xf32> to vector<16x32xf32>
    %206 = tpu.concatenate %184, %205 in 1 : vector<16x32xf32>, vector<16x32xf32> -> vector<16x64xf32>
    %c1_89 = arith.constant 1 : index
    %c0_90 = arith.constant 0 : index
    %c0_91 = arith.constant 0 : index
    %207 = vector.load %arg5[%c1_89, %c0_90, %c0_91] : memref<2x64x64xf32, #tpu.memory_space<vmem>>, vector<1x64x64xf32>
    %208 = vector.shape_cast %207 : vector<1x64x64xf32> to vector<64x64xf32>
    %cst_92 = arith.constant dense<0.000000e+00> : vector<16x64xf32>
    %209 = tpu.matmul %206, %208, %cst_92 {dimension_numbers = #tpu.dot_dimension_numbers<[1], [0], [0], [1], [0, 0, 1, 1], [], []>} : vector<16x64xf32>, vector<64x64xf32>, vector<16x64xf32> -> vector<16x64xf32>
    %c1_93 = arith.constant 1 : index
    %c0_94 = arith.constant 0 : index
    %c0_95 = arith.constant 0 : index
    %210 = vector.load %arg6[%c1_93, %c0_94, %c0_95] : memref<2x1x64xf32, #tpu.memory_space<vmem>>, vector<1x1x64xf32>
    %211 = vector.shape_cast %210 : vector<1x1x64xf32> to vector<1x64xf32>
    %212 = vector.broadcast %211 : vector<1x64xf32> to vector<16x64xf32>
    %213 = arith.addf %209, %212 : vector<16x64xf32>
    %214 = arith.addf %213, %156 : vector<16x64xf32>
    %c1_96 = arith.constant 1 : index
    %c0_97 = arith.constant 0 : index
    %c0_98 = arith.constant 0 : index
    %215 = vector.load %arg7[%c1_96, %c0_97, %c0_98] : memref<2x1x64xf32, #tpu.memory_space<vmem>>, vector<1x1x64xf32>
    %216 = vector.shape_cast %215 : vector<1x1x64xf32> to vector<1x64xf32>
    %c1_99 = arith.constant 1 : index
    %c0_100 = arith.constant 0 : index
    %c0_101 = arith.constant 0 : index
    %217 = vector.load %arg8[%c1_99, %c0_100, %c0_101] : memref<2x1x64xf32, #tpu.memory_space<vmem>>, vector<1x1x64xf32>
    %218 = vector.shape_cast %217 : vector<1x1x64xf32> to vector<1x64xf32>
    %cst_102 = arith.constant dense<0.000000e+00> : vector<16xf32>
    %219 = vector.multi_reduction <add>, %214, %cst_102 [1] : vector<16x64xf32> to vector<16xf32>
    %220 = vector.shape_cast %219 : vector<16xf32> to vector<16x1xf32>
    %cst_103 = arith.constant 6.400000e+01 : f32
    %221 = vector.broadcast %cst_103 : f32 to vector<16x1xf32>
    %222 = arith.divf %220, %221 : vector<16x1xf32>
    %223 = vector.broadcast %222 : vector<16x1xf32> to vector<16x64xf32>
    %224 = arith.subf %214, %223 : vector<16x64xf32>
    %225 = arith.mulf %224, %224 : vector<16x64xf32>
    %cst_104 = arith.constant dense<0.000000e+00> : vector<16xf32>
    %226 = vector.multi_reduction <add>, %225, %cst_104 [1] : vector<16x64xf32> to vector<16xf32>
    %227 = vector.shape_cast %226 : vector<16xf32> to vector<16x1xf32>
    %cst_105 = arith.constant 6.400000e+01 : f32
    %228 = vector.broadcast %cst_105 : f32 to vector<16x1xf32>
    %229 = arith.divf %227, %228 : vector<16x1xf32>
    %cst_106 = arith.constant 9.99999996E-13 : f32
    %230 = vector.broadcast %cst_106 : f32 to vector<16x1xf32>
    %231 = arith.addf %229, %230 : vector<16x1xf32>
    %232 = math.rsqrt %231 : vector<16x1xf32>
    %233 = vector.broadcast %232 : vector<16x1xf32> to vector<16x64xf32>
    %234 = arith.mulf %224, %233 : vector<16x64xf32>
    %235 = vector.broadcast %216 : vector<1x64xf32> to vector<16x64xf32>
    %236 = arith.mulf %234, %235 : vector<16x64xf32>
    %237 = vector.broadcast %218 : vector<1x64xf32> to vector<16x64xf32>
    %238 = arith.addf %236, %237 : vector<16x64xf32>
    %c1_107 = arith.constant 1 : index
    %c0_108 = arith.constant 0 : index
    %c0_109 = arith.constant 0 : index
    %239 = vector.load %arg9[%c1_107, %c0_108, %c0_109] : memref<2x64x128xf32, #tpu.memory_space<vmem>>, vector<1x64x128xf32>
    %240 = vector.shape_cast %239 : vector<1x64x128xf32> to vector<64x128xf32>
    %cst_110 = arith.constant dense<0.000000e+00> : vector<16x128xf32>
    %241 = tpu.matmul %238, %240, %cst_110 {dimension_numbers = #tpu.dot_dimension_numbers<[1], [0], [0], [1], [0, 0, 1, 1], [], []>} : vector<16x64xf32>, vector<64x128xf32>, vector<16x128xf32> -> vector<16x128xf32>
    %c1_111 = arith.constant 1 : index
    %c0_112 = arith.constant 0 : index
    %c0_113 = arith.constant 0 : index
    %242 = vector.load %arg10[%c1_111, %c0_112, %c0_113] : memref<2x1x128xf32, #tpu.memory_space<vmem>>, vector<1x1x128xf32>
    %243 = vector.shape_cast %242 : vector<1x1x128xf32> to vector<1x128xf32>
    %244 = vector.broadcast %243 : vector<1x128xf32> to vector<16x128xf32>
    %245 = arith.addf %241, %244 : vector<16x128xf32>
    %246 = arith.mulf %245, %245 : vector<16x128xf32>
    %247 = arith.mulf %245, %246 : vector<16x128xf32>
    %cst_114 = arith.constant 4.471500e-02 : f32
    %248 = vector.broadcast %cst_114 : f32 to vector<16x128xf32>
    %249 = arith.mulf %248, %247 : vector<16x128xf32>
    %250 = arith.addf %245, %249 : vector<16x128xf32>
    %cst_115 = arith.constant 0.797884583 : f32
    %251 = vector.broadcast %cst_115 : f32 to vector<16x128xf32>
    %252 = arith.mulf %251, %250 : vector<16x128xf32>
    %253 = math.tanh %252 : vector<16x128xf32>
    %cst_116 = arith.constant 1.000000e+00 : f32
    %254 = vector.broadcast %cst_116 : f32 to vector<16x128xf32>
    %255 = arith.addf %254, %253 : vector<16x128xf32>
    %cst_117 = arith.constant 5.000000e-01 : f32
    %256 = vector.broadcast %cst_117 : f32 to vector<16x128xf32>
    %257 = arith.mulf %256, %255 : vector<16x128xf32>
    %258 = arith.mulf %245, %257 : vector<16x128xf32>
    %c1_118 = arith.constant 1 : index
    %c0_119 = arith.constant 0 : index
    %c0_120 = arith.constant 0 : index
    %259 = vector.load %arg11[%c1_118, %c0_119, %c0_120] : memref<2x128x64xf32, #tpu.memory_space<vmem>>, vector<1x128x64xf32>
    %260 = vector.shape_cast %259 : vector<1x128x64xf32> to vector<128x64xf32>
    %cst_121 = arith.constant dense<0.000000e+00> : vector<16x64xf32>
    %261 = tpu.matmul %258, %260, %cst_121 {dimension_numbers = #tpu.dot_dimension_numbers<[1], [0], [0], [1], [0, 0, 1, 1], [], []>} : vector<16x128xf32>, vector<128x64xf32>, vector<16x64xf32> -> vector<16x64xf32>
    %c1_122 = arith.constant 1 : index
    %c0_123 = arith.constant 0 : index
    %c0_124 = arith.constant 0 : index
    %262 = vector.load %arg12[%c1_122, %c0_123, %c0_124] : memref<2x1x64xf32, #tpu.memory_space<vmem>>, vector<1x1x64xf32>
    %263 = vector.shape_cast %262 : vector<1x1x64xf32> to vector<1x64xf32>
    %264 = vector.broadcast %263 : vector<1x64xf32> to vector<16x64xf32>
    %265 = arith.addf %261, %264 : vector<16x64xf32>
    %266 = arith.addf %265, %238 : vector<16x64xf32>
    %c1_125 = arith.constant 1 : index
    %c0_126 = arith.constant 0 : index
    %c0_127 = arith.constant 0 : index
    %267 = vector.load %arg13[%c1_125, %c0_126, %c0_127] : memref<2x1x64xf32, #tpu.memory_space<vmem>>, vector<1x1x64xf32>
    %268 = vector.shape_cast %267 : vector<1x1x64xf32> to vector<1x64xf32>
    %c1_128 = arith.constant 1 : index
    %c0_129 = arith.constant 0 : index
    %c0_130 = arith.constant 0 : index
    %269 = vector.load %arg14[%c1_128, %c0_129, %c0_130] : memref<2x1x64xf32, #tpu.memory_space<vmem>>, vector<1x1x64xf32>
    %270 = vector.shape_cast %269 : vector<1x1x64xf32> to vector<1x64xf32>
    %cst_131 = arith.constant dense<0.000000e+00> : vector<16xf32>
    %271 = vector.multi_reduction <add>, %266, %cst_131 [1] : vector<16x64xf32> to vector<16xf32>
    %272 = vector.shape_cast %271 : vector<16xf32> to vector<16x1xf32>
    %cst_132 = arith.constant 6.400000e+01 : f32
    %273 = vector.broadcast %cst_132 : f32 to vector<16x1xf32>
    %274 = arith.divf %272, %273 : vector<16x1xf32>
    %275 = vector.broadcast %274 : vector<16x1xf32> to vector<16x64xf32>
    %276 = arith.subf %266, %275 : vector<16x64xf32>
    %277 = arith.mulf %276, %276 : vector<16x64xf32>
    %cst_133 = arith.constant dense<0.000000e+00> : vector<16xf32>
    %278 = vector.multi_reduction <add>, %277, %cst_133 [1] : vector<16x64xf32> to vector<16xf32>
    %279 = vector.shape_cast %278 : vector<16xf32> to vector<16x1xf32>
    %cst_134 = arith.constant 6.400000e+01 : f32
    %280 = vector.broadcast %cst_134 : f32 to vector<16x1xf32>
    %281 = arith.divf %279, %280 : vector<16x1xf32>
    %cst_135 = arith.constant 9.99999996E-13 : f32
    %282 = vector.broadcast %cst_135 : f32 to vector<16x1xf32>
    %283 = arith.addf %281, %282 : vector<16x1xf32>
    %284 = math.rsqrt %283 : vector<16x1xf32>
    %285 = vector.broadcast %284 : vector<16x1xf32> to vector<16x64xf32>
    %286 = arith.mulf %276, %285 : vector<16x64xf32>
    %287 = vector.broadcast %268 : vector<1x64xf32> to vector<16x64xf32>
    %288 = arith.mulf %286, %287 : vector<16x64xf32>
    %289 = vector.broadcast %270 : vector<1x64xf32> to vector<16x64xf32>
    %290 = arith.addf %288, %289 : vector<16x64xf32>
    %291 = vector.shape_cast %290 : vector<16x64xf32> to vector<2x8x64xf32>
    %292 = vector.extract_strided_slice %291 {offsets = [0, 0, 0], sizes = [2, 1, 64], strides = [1, 1, 1]} : vector<2x8x64xf32> to vector<2x1x64xf32>
    %293 = vector.shape_cast %292 : vector<2x1x64xf32> to vector<2x64xf32>
    %c0_136 = arith.constant 0 : index
    %c0_137 = arith.constant 0 : index
    %294 = vector.load %arg15[%c0_136, %c0_137] : memref<64x64xf32, #tpu.memory_space<vmem>>, vector<64x64xf32>
    %cst_138 = arith.constant dense<0.000000e+00> : vector<2x64xf32>
    %295 = tpu.matmul %293, %294, %cst_138 {dimension_numbers = #tpu.dot_dimension_numbers<[1], [0], [0], [1], [0, 0, 1, 1], [], []>} : vector<2x64xf32>, vector<64x64xf32>, vector<2x64xf32> -> vector<2x64xf32>
    %c0_139 = arith.constant 0 : index
    %c0_140 = arith.constant 0 : index
    %296 = vector.load %arg16[%c0_139, %c0_140] : memref<1x64xf32, #tpu.memory_space<vmem>>, vector<1x64xf32>
    %297 = vector.broadcast %296 : vector<1x64xf32> to vector<2x64xf32>
    %298 = arith.addf %295, %297 : vector<2x64xf32>
    %299 = math.tanh %298 : vector<2x64xf32>
    %c0_141 = arith.constant 0 : index
    %c0_142 = arith.constant 0 : index
    %300 = vector.load %arg17[%c0_141, %c0_142] : memref<64x32xf32, #tpu.memory_space<vmem>>, vector<64x32xf32>
    %cst_143 = arith.constant dense<0.000000e+00> : vector<2x32xf32>
    %301 = tpu.matmul %299, %300, %cst_143 {dimension_numbers = #tpu.dot_dimension_numbers<[1], [0], [0], [1], [0, 0, 1, 1], [], []>} : vector<2x64xf32>, vector<64x32xf32>, vector<2x32xf32> -> vector<2x32xf32>
    %c0_144 = arith.constant 0 : index
    %c0_145 = arith.constant 0 : index
    %302 = vector.load %arg18[%c0_144, %c0_145] : memref<1x32xf32, #tpu.memory_space<vmem>>, vector<1x32xf32>
    %303 = vector.broadcast %302 : vector<1x32xf32> to vector<2x32xf32>
    %304 = arith.addf %301, %303 : vector<2x32xf32>
    %cst_146 = arith.constant 0.000000e+00 : f32
    %305 = vector.broadcast %cst_146 : f32 to vector<2x32xf32>
    %306 = arith.maximumf %304, %305 : vector<2x32xf32>
    %c0_147 = arith.constant 0 : index
    %c0_148 = arith.constant 0 : index
    %307 = vector.load %arg19[%c0_147, %c0_148] : memref<32x128xf32, #tpu.memory_space<vmem>>, vector<32x128xf32>
    %cst_149 = arith.constant dense<0.000000e+00> : vector<2x128xf32>
    %308 = tpu.matmul %306, %307, %cst_149 {dimension_numbers = #tpu.dot_dimension_numbers<[1], [0], [0], [1], [0, 0, 1, 1], [], []>} : vector<2x32xf32>, vector<32x128xf32>, vector<2x128xf32> -> vector<2x128xf32>
    %c0_150 = arith.constant 0 : index
    %c0_151 = arith.constant 0 : index
    %309 = vector.load %arg20[%c0_150, %c0_151] : memref<1x128xf32, #tpu.memory_space<vmem>>, vector<1x128xf32>
    %310 = vector.broadcast %309 : vector<1x128xf32> to vector<2x128xf32>
    %311 = arith.addf %308, %310 : vector<2x128xf32>
    %c0_152 = arith.constant 0 : index
    %c0_153 = arith.constant 0 : index
    %312 = vector.load %arg21[%c0_152, %c0_153] : memref<2x128xf32, #tpu.memory_space<vmem>>, vector<2x128xf32>
    tpu.vector_store %arg21[%c0_152, %c0_153], %311 {strides = array<i32>} : memref<2x128xf32, #tpu.memory_space<vmem>>, vector<2x128xf32>,
    return
  }
}

</mosaic_0001>

<llo_original>
// kernel: task_prediction_type.1
$region0: #{task_prediction_type.1}
  #allocation0 [shape = 'u32[]', space=smem, size = 0x4, offset = 0x4, fixed_abs, tag = 'smem constant byte address 0x4 - core index']
  #allocation1 [shape = 'u32[72,128]{1,0:T(1,128)}', space=vmem, size = 0x9000, scoped, tag = 'internal scratch']
  %s0 = inlined_call_operand.vmem [shape: f32[16,64], index: 0, kind: input, shape index: {}]
  %s1 = inlined_call_operand.vmem [shape: f32[1,64], index: 1, kind: input, shape index: {}]
  %s2 = inlined_call_operand.vmem [shape: f32[1,64], index: 2, kind: input, shape index: {}]
  %s3 = inlined_call_operand.vmem [shape: f32[2,64,192], index: 3, kind: input, shape index: {}]
  %s4 = inlined_call_operand.vmem [shape: f32[2,1,192], index: 4, kind: input, shape index: {}]
  %s5 = inlined_call_operand.vmem [shape: f32[2,64,64], index: 5, kind: input, shape index: {}]
  %s6 = inlined_call_operand.vmem [shape: f32[2,1,64], index: 6, kind: input, shape index: {}]
  %s7 = inlined_call_operand.vmem [shape: f32[2,1,64], index: 7, kind: input, shape index: {}]
  %s8 = inlined_call_operand.vmem [shape: f32[2,1,64], index: 8, kind: input, shape index: {}]
  %s9 = inlined_call_operand.vmem [shape: f32[2,64,128], index: 9, kind: input, shape index: {}]
  %s10 = inlined_call_operand.vmem [shape: f32[2,1,128], index: 10, kind: input, shape index: {}]
  %s11 = inlined_call_operand.vmem [shape: f32[2,128,64], index: 11, kind: input, shape index: {}]
  %s12 = inlined_call_operand.vmem [shape: f32[2,1,64], index: 12, kind: input, shape index: {}]
  %s13 = inlined_call_operand.vmem [shape: f32[2,1,64], index: 13, kind: input, shape index: {}]
  %s14 = inlined_call_operand.vmem [shape: f32[2,1,64], index: 14, kind: input, shape index: {}]
  %s15 = inlined_call_operand.vmem [shape: f32[64,64], index: 15, kind: input, shape index: {}]
  %s16 = inlined_call_operand.vmem [shape: f32[1,64], index: 16, kind: input, shape index: {}]
  %s17 = inlined_call_operand.vmem [shape: f32[64,32], index: 17, kind: input, shape index: {}]
  %s18 = inlined_call_operand.vmem [shape: f32[1,32], index: 18, kind: input, shape index: {}]
  %s19 = inlined_call_operand.vmem [shape: f32[32,128], index: 19, kind: input, shape index: {}]
  %s20 = inlined_call_operand.vmem [shape: f32[1,128], index: 20, kind: input, shape index: {}]
  %s21 = inlined_call_operand.hbm [shape: f32[2,128], index: 21, kind: output, shape index: {}]
  %s22 = sld [smem:[#allocation0]]
  $region94: #{task_prediction_type.1} parent=0
    _
  %s24 = ssub.s32 1, %s22
  %s25 = scalar_select 0, %s24, %s22
  $region1: #{task_prediction_type.1} parent=0
    #allocation2 [shape = 'u8[1024]{0}', space=vmem, size = 0x400, scoped, tag = 'output window, operand 0, single buffered']
    #allocation3 [shape = 's32[1]{0}', space=sflag, size = 0x4, scoped, tag = 'scoped memory for task_prediction_type.1']
    %26 = vsyncpa [#allocation3], 0
    // Predicated region
    $region2: #{task_prediction_type.1} parent=1 // pred_check
      _
    $region3: #{task_prediction_type.1} parent=1 // pred_check_branch
      %28 = sbr.rel (0) target = $region5
    $region4: #{task_prediction_type.1} parent=1 // pred_region
      _
    $region5: #{task_prediction_type.1} parent=1 // pred_fallthru
      _
    // Predicated region
    $region6: #{task_prediction_type.1} parent=1 // pred_check
      _
    $region7: #{task_prediction_type.1} parent=1 // pred_check_branch
      %30 = sbr.rel (0) target = $region9
    $region8: #{task_prediction_type.1} parent=1 // pred_region
      _
    $region9: #{task_prediction_type.1} parent=1 // pred_fallthru
      _
    // Predicated region
    $region10: #{task_prediction_type.1} parent=1 // pred_check
      _
    $region11: #{task_prediction_type.1} parent=1 // pred_check_branch
      %32 = sbr.rel (0) target = $region13
    $region12: #{task_prediction_type.1} parent=1 // pred_region
      _
    $region13: #{task_prediction_type.1} parent=1 // pred_fallthru
      _
    // Predicated region
    $region14: #{task_prediction_type.1} parent=1 // pred_check
      _
    $region15: #{task_prediction_type.1} parent=1 // pred_check_branch
      %34 = sbr.rel (0) target = $region17
    $region16: #{task_prediction_type.1} parent=1 // pred_region
      _
    $region17: #{task_prediction_type.1} parent=1 // pred_fallthru
      _
    // Predicated region
    $region18: #{task_prediction_type.1} parent=1 // pred_check
      _
    $region19: #{task_prediction_type.1} parent=1 // pred_check_branch
      %36 = sbr.rel (0) target = $region21
    $region20: #{task_prediction_type.1} parent=1 // pred_region
      _
    $region21: #{task_prediction_type.1} parent=1 // pred_fallthru
      _
    // Predicated region
    $region22: #{task_prediction_type.1} parent=1 // pred_check
      _
    $region23: #{task_prediction_type.1} parent=1 // pred_check_branch
      %38 = sbr.rel (0) target = $region25
    $region24: #{task_prediction_type.1} parent=1 // pred_region
      _
    $region25: #{task_prediction_type.1} parent=1 // pred_fallthru
      _
    // Predicated region
    $region26: #{task_prediction_type.1} parent=1 // pred_check
      _
    $region27: #{task_prediction_type.1} parent=1 // pred_check_branch
      %40 = sbr.rel (0) target = $region29
    $region28: #{task_prediction_type.1} parent=1 // pred_region
      _
    $region29: #{task_prediction_type.1} parent=1 // pred_fallthru
      _
    // Predicated region
    $region30: #{task_prediction_type.1} parent=1 // pred_check
      _
    $region31: #{task_prediction_type.1} parent=1 // pred_check_branch
      %42 = sbr.rel (0) target = $region33
    $region32: #{task_prediction_type.1} parent=1 // pred_region
      _
    $region33: #{task_prediction_type.1} parent=1 // pred_fallthru
      _
    // Predicated region
    $region34: #{task_prediction_type.1} parent=1 // pred_check
      _
    $region35: #{task_prediction_type.1} parent=1 // pred_check_branch
      %44 = sbr.rel (0) target = $region37
    $region36: #{task_prediction_type.1} parent=1 // pred_region
      _
    $region37: #{task_prediction_type.1} parent=1 // pred_fallthru
      _
    // Predicated region
    $region38: #{task_prediction_type.1} parent=1 // pred_check
      _
    $region39: #{task_prediction_type.1} parent=1 // pred_check_branch
      %46 = sbr.rel (0) target = $region41
    $region40: #{task_prediction_type.1} parent=1 // pred_region
      _
    $region41: #{task_prediction_type.1} parent=1 // pred_fallthru
      _
    // Predicated region
    $region42: #{task_prediction_type.1} parent=1 // pred_check
      _
    $region43: #{task_prediction_type.1} parent=1 // pred_check_branch
      %48 = sbr.rel (0) target = $region45
    $region44: #{task_prediction_type.1} parent=1 // pred_region
      _
    $region45: #{task_prediction_type.1} parent=1 // pred_fallthru
      _
    // Predicated region
    $region46: #{task_prediction_type.1} parent=1 // pred_check
      _
    $region47: #{task_prediction_type.1} parent=1 // pred_check_branch
      %50 = sbr.rel (0) target = $region49
    $region48: #{task_prediction_type.1} parent=1 // pred_region
      _
    $region49: #{task_prediction_type.1} parent=1 // pred_fallthru
      _
    // Predicated region
    $region50: #{task_prediction_type.1} parent=1 // pred_check
      _
    $region51: #{task_prediction_type.1} parent=1 // pred_check_branch
      %52 = sbr.rel (0) target = $region53
    $region52: #{task_prediction_type.1} parent=1 // pred_region
      _
    $region53: #{task_prediction_type.1} parent=1 // pred_fallthru
      _
    // Predicated region
    $region54: #{task_prediction_type.1} parent=1 // pred_check
      _
    $region55: #{task_prediction_type.1} parent=1 // pred_check_branch
      %54 = sbr.rel (0) target = $region57
    $region56: #{task_prediction_type.1} parent=1 // pred_region
      _
    $region57: #{task_prediction_type.1} parent=1 // pred_fallthru
      _
    // Predicated region
    $region58: #{task_prediction_type.1} parent=1 // pred_check
      _
    $region59: #{task_prediction_type.1} parent=1 // pred_check_branch
      %56 = sbr.rel (0) target = $region61
    $region60: #{task_prediction_type.1} parent=1 // pred_region
      _
    $region61: #{task_prediction_type.1} parent=1 // pred_fallthru
      _
    // Predicated region
    $region62: #{task_prediction_type.1} parent=1 // pred_check
      _
    $region63: #{task_prediction_type.1} parent=1 // pred_check_branch
      %58 = sbr.rel (0) target = $region65
    $region64: #{task_prediction_type.1} parent=1 // pred_region
      _
    $region65: #{task_prediction_type.1} parent=1 // pred_fallthru
      _
    // Predicated region
    $region66: #{task_prediction_type.1} parent=1 // pred_check
      _
    $region67: #{task_prediction_type.1} parent=1 // pred_check_branch
      %60 = sbr.rel (0) target = $region69
    $region68: #{task_prediction_type.1} parent=1 // pred_region
      _
    $region69: #{task_prediction_type.1} parent=1 // pred_fallthru
      _
    // Predicated region
    $region70: #{task_prediction_type.1} parent=1 // pred_check
      _
    $region71: #{task_prediction_type.1} parent=1 // pred_check_branch
      %62 = sbr.rel (0) target = $region73
    $region72: #{task_prediction_type.1} parent=1 // pred_region
      _
    $region73: #{task_prediction_type.1} parent=1 // pred_fallthru
      _
    // Predicated region
    $region74: #{task_prediction_type.1} parent=1 // pred_check
      _
    $region75: #{task_prediction_type.1} parent=1 // pred_check_branch
      %64 = sbr.rel (0) target = $region77
    $region76: #{task_prediction_type.1} parent=1 // pred_region
      _
    $region77: #{task_prediction_type.1} parent=1 // pred_fallthru
      _
    // Predicated region
    $region78: #{task_prediction_type.1} parent=1 // pred_check
      _
    $region79: #{task_prediction_type.1} parent=1 // pred_check_branch
      %66 = sbr.rel (0) target = $region81
    $region80: #{task_prediction_type.1} parent=1 // pred_region
      _
    $region81: #{task_prediction_type.1} parent=1 // pred_fallthru
      _
    // Predicated region
    $region82: #{task_prediction_type.1} parent=1 // pred_check
      _
    $region83: #{task_prediction_type.1} parent=1 // pred_check_branch
      %68 = sbr.rel (0) target = $region85
    $region84: #{task_prediction_type.1} parent=1 // pred_region
      _
    $region85: #{task_prediction_type.1} parent=1 // pred_fallthru
      _
    %v69 = vld [vmem:[%s0] sm:$0xff]
    %v70 = vld [vmem:[%s0 + $0x8] sm:$0xff]
    %v71 = vld [vmem:[%s1] sm:$0x1]
    %v72 = vld [vmem:[%s2] sm:$0x1]
    %vm73 = vcmask 523264
    %v74 = vsel %vm73, %v69, 0.0
    %75 = vadd.xlane.f32.xlu0 %v74
    %v76 = vpop.xlane.xlu0 %75
    %v77 = vsel %vm73, %v70, 0.0
    %78 = vadd.xlane.f32.xlu0 %v77
    %v79 = vpop.xlane.xlu0 %78
    %v80 = vrcp.pop 64.0
    %v81 = vmul.f32 64.0, %v80
    %v82 = vsub.f32 1.0, %v81
    %v83 = vmul.f32 %v80, %v82
    %v84 = vadd.f32 %v80, %v83
    %vm85 = vweird.f32 %v80
    %v86 = vsel %vm85, %v80, %v84
    %v87 = vmul.f32 %v76, %v86
    %v88 = vmul.f32 %v79, %v86
    %v89 = vsub.f32 %v69, %v87
    %v90 = vsub.f32 %v70, %v88
    %v91 = vmul.f32 %v89, %v89
    %v92 = vmul.f32 %v90, %v90
    %v93 = vsel %vm73, %v91, 0.0
    %94 = vadd.xlane.f32.xlu0 %v93
    %v95 = vpop.xlane.xlu0 %94
    %v96 = vsel %vm73, %v92, 0.0
    %97 = vadd.xlane.f32.xlu0 %v96
    %v98 = vpop.xlane.xlu0 %97
    %v99 = vmul.f32 %v95, %v86
    %v100 = vmul.f32 %v98, %v86
    %v101 = vadd.f32 %v99, 1e-12
    %v102 = vadd.f32 %v100, 1e-12
    %v103 = vrsqrt.pop %v101
    %v104 = vmul.f32 %v103, %v101
    %v105 = vmul.f32 %v104, %v103
    %v106 = vmul.f32 0.5, %v105
    %v107 = vsub.f32 1.5, %v106
    %v108 = vmul.f32 %v103, %v107
    %vm109 = vweird.f32 %v101
    %vm110 = vweird.f32 %v103
    %vm111 = vmor %vm109, %vm110
    %v112 = vsel %vm111, %v103, %v108
    %v113 = vrsqrt.pop %v102
    %v114 = vmul.f32 %v113, %v102
    %v115 = vmul.f32 %v114, %v113
    %v116 = vmul.f32 0.5, %v115
    %v117 = vsub.f32 1.5, %v116
    %v118 = vmul.f32 %v113, %v117
    %vm119 = vweird.f32 %v102
    %vm120 = vweird.f32 %v113
    %vm121 = vmor %vm119, %vm120
    %v122 = vsel %vm121, %v113, %v118
    %v123 = vmul.f32 %v89, %v112
    %v124 = vmul.f32 %v90, %v122
    %v126 = vperm.slane %v71, 0
    %v128 = vmul.f32 %v123, %v126
    %v129 = vmul.f32 %v124, %v126
    %v131 = vperm.slane %v72, 0
    %v133 = vadd.f32 %v128, %v131
    %v134 = vadd.f32 %v129, %v131
    %v135 = vld [vmem:[%s3] sm:$0xff]
    %v136 = vld [vmem:[%s3 + $0x8] sm:$0xff]
    %v137 = vld [vmem:[%s3 + $0x10] sm:$0xff]
    %v138 = vld [vmem:[%s3 + $0x18] sm:$0xff]
    %v139 = vld [vmem:[%s3 + $0x20] sm:$0xff]
    %v140 = vld [vmem:[%s3 + $0x28] sm:$0xff]
    %v141 = vld [vmem:[%s3 + $0x30] sm:$0xff]
    %v142 = vld [vmem:[%s3 + $0x38] sm:$0xff]
    %v143 = vld [vmem:[%s3 + $0x40] sm:$0xff]
    %v144 = vld [vmem:[%s3 + $0x48] sm:$0xff]
    %v145 = vld [vmem:[%s3 + $0x50] sm:$0xff]
    %v146 = vld [vmem:[%s3 + $0x58] sm:$0xff]
    %v147 = vld [vmem:[%s3 + $0x60] sm:$0xff]
    %v148 = vld [vmem:[%s3 + $0x68] sm:$0xff]
    %v149 = vld [vmem:[%s3 + $0x70] sm:$0xff]
    %v150 = vld [vmem:[%s3 + $0x78] sm:$0xff]
    %v151 = vld [vmem:[%s4] sm:$0x3]
    %v153 = vperm.slane %v151, 0
    %v154 = vperm.slane %v151, 1
    %v158 = vsel %vm73, %v133, 0
    %v161 = vsel %vm73, %v134, 0
    %163 = vmatpush.msra.mxu0 0.0
    %164 = vmatpush.msra.mxu0 0.0
    %165 = vmatpush.msra.mxu0 0.0
    %166 = vmatpush.msra.mxu0 0.0
    %167 = vmatpush.msra.mxu0 0.0
    %168 = vmatpush.msra.mxu0 0.0
    %169 = vmatpush.msra.mxu0 0.0
    %170 = vmatpush.msra.mxu0 0.0
    %171 = vmatpush.msra.mxu0 %v149
    %172 = vmatpush.msra.mxu0 %v147
    %173 = vmatpush.msra.mxu0 %v145
    %174 = vmatpush.msra.mxu0 %v143
    %175 = vmatpush.msra.mxu0 %v141
    %176 = vmatpush.msra.mxu0 %v139
    %177 = vmatpush.msra.mxu0 %v137
    %178 = vmatpush.msra.mxu0 %v135
    %179 = vmatmul.f32.gmra.mxu0 %v158
    %v180 = vpop.f32.mrf.mxu0
    %v181 = vadd.f32 %v153, %v180
    %182 = vmatmul.f32.gmra.mxu0 %v161
    %v183 = vpop.f32.mrf.mxu0
    %v184 = vadd.f32 %v153, %v183
    %185 = vdwg.mxu0
    %186 = vmatpush.msra.mxu0 0.0
    %187 = vmatpush.msra.mxu0 0.0
    %188 = vmatpush.msra.mxu0 0.0
    %189 = vmatpush.msra.mxu0 0.0
    %190 = vmatpush.msra.mxu0 0.0
    %191 = vmatpush.msra.mxu0 0.0
    %192 = vmatpush.msra.mxu0 0.0
    %193 = vmatpush.msra.mxu0 0.0
    %194 = vmatpush.msra.mxu0 %v150
    %195 = vmatpush.msra.mxu0 %v148
    %196 = vmatpush.msra.mxu0 %v146
    %197 = vmatpush.msra.mxu0 %v144
    %198 = vmatpush.msra.mxu0 %v142
    %199 = vmatpush.msra.mxu0 %v140
    %200 = vmatpush.msra.mxu0 %v138
    %201 = vmatpush.msra.mxu0 %v136
    %202 = vmatmul.f32.gmra.mxu0 %v158
    %v203 = vpop.f32.mrf.mxu0
    %v204 = vadd.f32 %v154, %v203
    %205 = vmatmul.f32.gmra.mxu0 %v161
    %v206 = vpop.f32.mrf.mxu0
    %v207 = vadd.f32 %v154, %v206
    %208 = vdwg.mxu0
    %210 = vrot.lane.b32.xlu0 %v181, 64
    %v211 = vpop.permute.xlu0 %210
    %vm212 = vcmask 261120
    %v213 = vsel %vm212, %v181, 0
    %v215 = vsel %vm212, %v211, 0
    %217 = vmatpush.xpose.msra.mxu0 0.0
    %218 = vmatpush.xpose.msra.mxu0 0.0
    %219 = vmatpush.xpose.msra.mxu0 0.0
    %220 = vmatpush.xpose.msra.mxu0 0.0
    %221 = vmatpush.xpose.msra.mxu0 0.0
    %222 = vmatpush.xpose.msra.mxu0 0.0
    %223 = vmatpush.xpose.msra.mxu0 0.0
    %224 = vmatpush.xpose.msra.mxu0 0.0
    %225 = vmatpush.xpose.msra.mxu0 0.0
    %226 = vmatpush.xpose.msra.mxu0 0.0
    %227 = vmatpush.xpose.msra.mxu0 0.0
    %228 = vmatpush.xpose.msra.mxu0 0.0
    %229 = vmatpush.xpose.msra.mxu0 0.0
    %230 = vmatpush.xpose.msra.mxu0 0.0
    %231 = vmatpush.xpose.msra.mxu0 0.0
    %232 = vmatpush.xpose.msra.mxu0 %v215
    %233 = vmatmul.f32.gmra.mxu0 %v213
    %v234 = vpop.f32.mrf.mxu0
    %v235 = vadd.f32 0.0, %v234
    %236 = vdwg.mxu0
    %238 = vrot.lane.b32.xlu0 %v184, 64
    %v239 = vpop.permute.xlu0 %238
    %v240 = vsel %vm212, %v184, 0
    %v242 = vsel %vm212, %v239, 0
    %244 = vmatpush.xpose.msra.mxu0 0.0
    %245 = vmatpush.xpose.msra.mxu0 0.0
    %246 = vmatpush.xpose.msra.mxu0 0.0
    %247 = vmatpush.xpose.msra.mxu0 0.0
    %248 = vmatpush.xpose.msra.mxu0 0.0
    %249 = vmatpush.xpose.msra.mxu0 0.0
    %250 = vmatpush.xpose.msra.mxu0 0.0
    %251 = vmatpush.xpose.msra.mxu0 0.0
    %252 = vmatpush.xpose.msra.mxu0 0.0
    %253 = vmatpush.xpose.msra.mxu0 0.0
    %254 = vmatpush.xpose.msra.mxu0 0.0
    %255 = vmatpush.xpose.msra.mxu0 0.0
    %256 = vmatpush.xpose.msra.mxu0 0.0
    %257 = vmatpush.xpose.msra.mxu0 0.0
    %258 = vmatpush.xpose.msra.mxu0 0.0
    %259 = vmatpush.xpose.msra.mxu0 %v242
    %260 = vmatmul.f32.gmra.mxu0 %v240
    %v261 = vpop.f32.mrf.mxu0
    %v262 = vadd.f32 0.0, %v261
    %263 = vdwg.mxu0
    %v264 = vmul.f32 %v235, 0.17677669
    %v265 = vmul.f32 %v262, 0.17677669
    %vm266 = vcmask 64512
    %v267 = vsel %vm266, %v264, -inf
    %268 = vmax.xlane.f32.xlu0 %v267
    %v269 = vpop.xlane.xlu0 %268
    %v270 = vsel %vm266, %v265, -inf
    %271 = vmax.xlane.f32.xlu0 %v270
    %v272 = vpop.xlane.xlu0 %271
    %v273 = vsub.f32 %v264, %v269
    %v274 = vsub.f32 %v265, %v272
    %v275 = vmul.f32 %v273, 1.442695
    %v276 = vpow.pop %v275
    %v277 = vmul.f32 %v274, 1.442695
    %v278 = vpow.pop %v277
    %v279 = vsel %vm266, %v276, 0.0
    %280 = vadd.xlane.f32.xlu0 %v279
    %v281 = vpop.xlane.xlu0 %280
    %v282 = vsel %vm266, %v278, 0.0
    %283 = vadd.xlane.f32.xlu0 %v282
    %v284 = vpop.xlane.xlu0 %283
    %v285 = vrcp.pop %v281
    %v286 = vrcp.pop %v284
    %v287 = vmul.f32 %v276, %v285
    %v288 = vmul.f32 %v278, %v286
    %v290 = vsel %vm266, %v287, 0
    %292 = vmatpush.msra.mxu0 0.0
    %293 = vmatpush.msra.mxu0 0.0
    %294 = vmatpush.msra.mxu0 0.0
    %295 = vmatpush.msra.mxu0 0.0
    %296 = vmatpush.msra.mxu0 0.0
    %297 = vmatpush.msra.mxu0 0.0
    %298 = vmatpush.msra.mxu0 0.0
    %299 = vmatpush.msra.mxu0 0.0
    %300 = vmatpush.msra.mxu0 0.0
    %301 = vmatpush.msra.mxu0 0.0
    %302 = vmatpush.msra.mxu0 0.0
    %303 = vmatpush.msra.mxu0 0.0
    %304 = vmatpush.msra.mxu0 0.0
    %305 = vmatpush.msra.mxu0 0.0
    %306 = vmatpush.msra.mxu0 0.0
    %307 = vmatpush.msra.mxu0 %v204
    %308 = vmatmul.f32.gmra.mxu0 %v290
    %v309 = vpop.f32.mrf.mxu0
    %v310 = vadd.f32 0.0, %v309
    %311 = vdwg.mxu0
    %v313 = vsel %vm266, %v288, 0
    %315 = vmatpush.msra.mxu0 0.0
    %316 = vmatpush.msra.mxu0 0.0
    %317 = vmatpush.msra.mxu0 0.0
    %318 = vmatpush.msra.mxu0 0.0
    %319 = vmatpush.msra.mxu0 0.0
    %320 = vmatpush.msra.mxu0 0.0
    %321 = vmatpush.msra.mxu0 0.0
    %322 = vmatpush.msra.mxu0 0.0
    %323 = vmatpush.msra.mxu0 0.0
    %324 = vmatpush.msra.mxu0 0.0
    %325 = vmatpush.msra.mxu0 0.0
    %326 = vmatpush.msra.mxu0 0.0
    %327 = vmatpush.msra.mxu0 0.0
    %328 = vmatpush.msra.mxu0 0.0
    %329 = vmatpush.msra.mxu0 0.0
    %330 = vmatpush.msra.mxu0 %v207
    %331 = vmatmul.f32.gmra.mxu0 %v313
    %v332 = vpop.f32.mrf.mxu0
    %v333 = vadd.f32 0.0, %v332
    %334 = vdwg.mxu0
    %335 = vrot.lane.b32.xlu0 %v181, 96
    %v336 = vpop.permute.xlu0 %335
    %337 = vrot.lane.b32.xlu0 %v181, 32
    %v338 = vpop.permute.xlu0 %337
    %v339 = vsel %vm212, %v336, 0
    %v341 = vsel %vm212, %v338, 0
    %343 = vmatpush.xpose.msra.mxu0 0.0
    %344 = vmatpush.xpose.msra.mxu0 0.0
    %345 = vmatpush.xpose.msra.mxu0 0.0
    %346 = vmatpush.xpose.msra.mxu0 0.0
    %347 = vmatpush.xpose.msra.mxu0 0.0
    %348 = vmatpush.xpose.msra.mxu0 0.0
    %349 = vmatpush.xpose.msra.mxu0 0.0
    %350 = vmatpush.xpose.msra.mxu0 0.0
    %351 = vmatpush.xpose.msra.mxu0 0.0
    %352 = vmatpush.xpose.msra.mxu0 0.0
    %353 = vmatpush.xpose.msra.mxu0 0.0
    %354 = vmatpush.xpose.msra.mxu0 0.0
    %355 = vmatpush.xpose.msra.mxu0 0.0
    %356 = vmatpush.xpose.msra.mxu0 0.0
    %357 = vmatpush.xpose.msra.mxu0 0.0
    %358 = vmatpush.xpose.msra.mxu0 %v341
    %359 = vmatmul.f32.gmra.mxu0 %v339
    %v360 = vpop.f32.mrf.mxu0
    %v361 = vadd.f32 0.0, %v360
    %362 = vdwg.mxu0
    %363 = vrot.lane.b32.xlu0 %v184, 96
    %v364 = vpop.permute.xlu0 %363
    %365 = vrot.lane.b32.xlu0 %v184, 32
    %v366 = vpop.permute.xlu0 %365
    %v367 = vsel %vm212, %v364, 0
    %v369 = vsel %vm212, %v366, 0
    %371 = vmatpush.xpose.msra.mxu0 0.0
    %372 = vmatpush.xpose.msra.mxu0 0.0
    %373 = vmatpush.xpose.msra.mxu0 0.0
    %374 = vmatpush.xpose.msra.mxu0 0.0
    %375 = vmatpush.xpose.msra.mxu0 0.0
    %376 = vmatpush.xpose.msra.mxu0 0.0
    %377 = vmatpush.xpose.msra.mxu0 0.0
    %378 = vmatpush.xpose.msra.mxu0 0.0
    %379 = vmatpush.xpose.msra.mxu0 0.0
    %380 = vmatpush.xpose.msra.mxu0 0.0
    %381 = vmatpush.xpose.msra.mxu0 0.0
    %382 = vmatpush.xpose.msra.mxu0 0.0
    %383 = vmatpush.xpose.msra.mxu0 0.0
    %384 = vmatpush.xpose.msra.mxu0 0.0
    %385 = vmatpush.xpose.msra.mxu0 0.0
    %386 = vmatpush.xpose.msra.mxu0 %v369
    %387 = vmatmul.f32.gmra.mxu0 %v367
    %v388 = vpop.f32.mrf.mxu0
    %v389 = vadd.f32 0.0, %v388
    %390 = vdwg.mxu0
    %v391 = vmul.f32 %v361, 0.17677669
    %v392 = vmul.f32 %v389, 0.17677669
    %v393 = vsel %vm266, %v391, -inf
    %394 = vmax.xlane.f32.xlu0 %v393
    %v395 = vpop.xlane.xlu0 %394
    %v396 = vsel %vm266, %v392, -inf
    %397 = vmax.xlane.f32.xlu0 %v396
    %v398 = vpop.xlane.xlu0 %397
    %v399 = vsub.f32 %v391, %v395
    %v400 = vsub.f32 %v392, %v398
    %v401 = vmul.f32 %v399, 1.442695
    %v402 = vpow.pop %v401
    %v403 = vmul.f32 %v400, 1.442695
    %v404 = vpow.pop %v403
    %v405 = vsel %vm266, %v402, 0.0
    %406 = vadd.xlane.f32.xlu0 %v405
    %v407 = vpop.xlane.xlu0 %406
    %v408 = vsel %vm266, %v404, 0.0
    %409 = vadd.xlane.f32.xlu0 %v408
    %v410 = vpop.xlane.xlu0 %409
    %v411 = vrcp.pop %v407
    %v412 = vrcp.pop %v410
    %v413 = vmul.f32 %v402, %v411
    %v414 = vmul.f32 %v404, %v412
    %416 = vrot.lane.b32.xlu0 %v204, 96
    %v417 = vpop.permute.xlu0 %416
    %v420 = vsel %vm266, %v413, 0
    %422 = vmatpush.msra.mxu0 0.0
    %423 = vmatpush.msra.mxu0 0.0
    %424 = vmatpush.msra.mxu0 0.0
    %425 = vmatpush.msra.mxu0 0.0
    %426 = vmatpush.msra.mxu0 0.0
    %427 = vmatpush.msra.mxu0 0.0
    %428 = vmatpush.msra.mxu0 0.0
    %429 = vmatpush.msra.mxu0 0.0
    %430 = vmatpush.msra.mxu0 0.0
    %431 = vmatpush.msra.mxu0 0.0
    %432 = vmatpush.msra.mxu0 0.0
    %433 = vmatpush.msra.mxu0 0.0
    %434 = vmatpush.msra.mxu0 0.0
    %435 = vmatpush.msra.mxu0 0.0
    %436 = vmatpush.msra.mxu0 0.0
    %437 = vmatpush.msra.mxu0 %v417
    %438 = vmatmul.f32.gmra.mxu0 %v420
    %v439 = vpop.f32.mrf.mxu0
    %v440 = vadd.f32 0.0, %v439
    %441 = vdwg.mxu0
    %443 = vrot.lane.b32.xlu0 %v207, 96
    %v444 = vpop.permute.xlu0 %443
    %v447 = vsel %vm266, %v414, 0
    %449 = vmatpush.msra.mxu0 0.0
    %450 = vmatpush.msra.mxu0 0.0
    %451 = vmatpush.msra.mxu0 0.0
    %452 = vmatpush.msra.mxu0 0.0
    %453 = vmatpush.msra.mxu0 0.0
    %454 = vmatpush.msra.mxu0 0.0
    %455 = vmatpush.msra.mxu0 0.0
    %456 = vmatpush.msra.mxu0 0.0
    %457 = vmatpush.msra.mxu0 0.0
    %458 = vmatpush.msra.mxu0 0.0
    %459 = vmatpush.msra.mxu0 0.0
    %460 = vmatpush.msra.mxu0 0.0
    %461 = vmatpush.msra.mxu0 0.0
    %462 = vmatpush.msra.mxu0 0.0
    %463 = vmatpush.msra.mxu0 0.0
    %464 = vmatpush.msra.mxu0 %v444
    %465 = vmatmul.f32.gmra.mxu0 %v447
    %v466 = vpop.f32.mrf.mxu0
    %v467 = vadd.f32 0.0, %v466
    %468 = vdwg.mxu0
    %471 = vrot.lane.b32.xlu0 %v440, 32
    %v472 = vpop.permute.xlu0 %471
    %473 = vrot.lane.b32.xlu0 %v467, 32
    %v474 = vpop.permute.xlu0 %473
    %v477 = vsel %vm212, %v310, %v472
    %v478 = vsel %vm212, %v333, %v474
    %v479 = vld [vmem:[%s5] sm:$0xff]
    %v480 = vld [vmem:[%s5 + $0x8] sm:$0xff]
    %v481 = vld [vmem:[%s5 + $0x10] sm:$0xff]
    %v482 = vld [vmem:[%s5 + $0x18] sm:$0xff]
    %v483 = vld [vmem:[%s5 + $0x20] sm:$0xff]
    %v484 = vld [vmem:[%s5 + $0x28] sm:$0xff]
    %v485 = vld [vmem:[%s5 + $0x30] sm:$0xff]
    %v486 = vld [vmem:[%s5 + $0x38] sm:$0xff]
    %v487 = vld [vmem:[%s6] sm:$0x1]
    %v489 = vperm.slane %v487, 0
    %v492 = vsel %vm73, %v477, 0
    %v495 = vsel %vm73, %v478, 0
    %497 = vmatpush.msra.mxu0 0.0
    %498 = vmatpush.msra.mxu0 0.0
    %499 = vmatpush.msra.mxu0 0.0
    %500 = vmatpush.msra.mxu0 0.0
    %501 = vmatpush.msra.mxu0 0.0
    %502 = vmatpush.msra.mxu0 0.0
    %503 = vmatpush.msra.mxu0 0.0
    %504 = vmatpush.msra.mxu0 0.0
    %505 = vmatpush.msra.mxu0 %v486
    %506 = vmatpush.msra.mxu0 %v485
    %507 = vmatpush.msra.mxu0 %v484
    %508 = vmatpush.msra.mxu0 %v483
    %509 = vmatpush.msra.mxu0 %v482
    %510 = vmatpush.msra.mxu0 %v481
    %511 = vmatpush.msra.mxu0 %v480
    %512 = vmatpush.msra.mxu0 %v479
    %513 = vmatmul.f32.gmra.mxu0 %v492
    %v514 = vpop.f32.mrf.mxu0
    %v515 = vadd.f32 %v489, %v514
    %516 = vmatmul.f32.gmra.mxu0 %v495
    %v517 = vpop.f32.mrf.mxu0
    %v518 = vadd.f32 %v489, %v517
    %519 = vdwg.mxu0
    %v520 = vadd.f32 %v515, %v133
    %v521 = vadd.f32 %v518, %v134
    %v522 = vld [vmem:[%s7] sm:$0x1]
    %v523 = vld [vmem:[%s8] sm:$0x1]
    %v524 = vsel %vm73, %v520, 0.0
    %525 = vadd.xlane.f32.xlu0 %v524
    %v526 = vpop.xlane.xlu0 %525
    %v527 = vsel %vm73, %v521, 0.0
    %528 = vadd.xlane.f32.xlu0 %v527
    %v529 = vpop.xlane.xlu0 %528
    %v530 = vmul.f32 %v526, %v86
    %v531 = vmul.f32 %v529, %v86
    %v532 = vsub.f32 %v520, %v530
    %v533 = vsub.f32 %v521, %v531
    %v534 = vmul.f32 %v532, %v532
    %v535 = vmul.f32 %v533, %v533
    %v536 = vsel %vm73, %v534, 0.0
    %537 = vadd.xlane.f32.xlu0 %v536
    %v538 = vpop.xlane.xlu0 %537
    %v539 = vsel %vm73, %v535, 0.0
    %540 = vadd.xlane.f32.xlu0 %v539
    %v541 = vpop.xlane.xlu0 %540
    %v542 = vmul.f32 %v538, %v86
    %v543 = vmul.f32 %v541, %v86
    %v544 = vadd.f32 %v542, 1e-12
    %v545 = vadd.f32 %v543, 1e-12
    %v546 = vrsqrt.pop %v544
    %v547 = vmul.f32 %v546, %v544
    %v548 = vmul.f32 %v547, %v546
    %v549 = vmul.f32 0.5, %v548
    %v550 = vsub.f32 1.5, %v549
    %v551 = vmul.f32 %v546, %v550
    %vm552 = vweird.f32 %v544
    %vm553 = vweird.f32 %v546
    %vm554 = vmor %vm552, %vm553
    %v555 = vsel %vm554, %v546, %v551
    %v556 = vrsqrt.pop %v545
    %v557 = vmul.f32 %v556, %v545
    %v558 = vmul.f32 %v557, %v556
    %v559 = vmul.f32 0.5, %v558
    %v560 = vsub.f32 1.5, %v559
    %v561 = vmul.f32 %v556, %v560
    %vm562 = vweird.f32 %v545
    %vm563 = vweird.f32 %v556
    %vm564 = vmor %vm562, %vm563
    %v565 = vsel %vm564, %v556, %v561
    %v566 = vmul.f32 %v532, %v555
    %v567 = vmul.f32 %v533, %v565
    %v569 = vperm.slane %v522, 0
    %v571 = vmul.f32 %v566, %v569
    %v572 = vmul.f32 %v567, %v569
    %v574 = vperm.slane %v523, 0
    %v576 = vadd.f32 %v571, %v574
    %v577 = vadd.f32 %v572, %v574
    %v578 = vld [vmem:[%s9] sm:$0xff]
    %v579 = vld [vmem:[%s9 + $0x8] sm:$0xff]
    %v580 = vld [vmem:[%s9 + $0x10] sm:$0xff]
    %v581 = vld [vmem:[%s9 + $0x18] sm:$0xff]
    %v582 = vld [vmem:[%s9 + $0x20] sm:$0xff]
    %v583 = vld [vmem:[%s9 + $0x28] sm:$0xff]
    %v584 = vld [vmem:[%s9 + $0x30] sm:$0xff]
    %v585 = vld [vmem:[%s9 + $0x38] sm:$0xff]
    %v586 = vld [vmem:[%s10] sm:$0x1]
    %v588 = vperm.slane %v586, 0
    %v591 = vsel %vm73, %v576, 0
    %v594 = vsel %vm73, %v577, 0
    %596 = vmatpush.msra.mxu0 0.0
    %597 = vmatpush.msra.mxu0 0.0
    %598 = vmatpush.msra.mxu0 0.0
    %599 = vmatpush.msra.mxu0 0.0
    %600 = vmatpush.msra.mxu0 0.0
    %601 = vmatpush.msra.mxu0 0.0
    %602 = vmatpush.msra.mxu0 0.0
    %603 = vmatpush.msra.mxu0 0.0
    %604 = vmatpush.msra.mxu0 %v585
    %605 = vmatpush.msra.mxu0 %v584
    %606 = vmatpush.msra.mxu0 %v583
    %607 = vmatpush.msra.mxu0 %v582
    %608 = vmatpush.msra.mxu0 %v581
    %609 = vmatpush.msra.mxu0 %v580
    %610 = vmatpush.msra.mxu0 %v579
    %611 = vmatpush.msra.mxu0 %v578
    %612 = vmatmul.f32.gmra.mxu0 %v591
    %v613 = vpop.f32.mrf.mxu0
    %v614 = vadd.f32 %v588, %v613
    %615 = vmatmul.f32.gmra.mxu0 %v594
    %v616 = vpop.f32.mrf.mxu0
    %v617 = vadd.f32 %v588, %v616
    %618 = vdwg.mxu0
    %v619 = vmul.f32 %v614, %v614
    %v620 = vmul.f32 %v617, %v617
    %v621 = vmul.f32 %v614, %v619
    %v622 = vmul.f32 %v617, %v620
    %v623 = vmul.f32 %v621, 0.044715
    %v624 = vmul.f32 %v622, 0.044715
    %v625 = vadd.f32 %v614, %v623
    %v626 = vadd.f32 %v617, %v624
    %v627 = vmul.f32 %v625, 0.7978846
    %v628 = vmul.f32 %v626, 0.7978846
    %v629 = vtanh.pop %v627
    %v630 = vtanh.pop %v628
    %v631 = vadd.f32 %v629, 1.0
    %v632 = vadd.f32 %v630, 1.0
    %v633 = vmul.f32 %v631, 0.5
    %v634 = vmul.f32 %v632, 0.5
    %v635 = vmul.f32 %v614, %v633
    %v636 = vmul.f32 %v617, %v634
    %v637 = vld [vmem:[%s11] sm:$0xff]
    %v638 = vld [vmem:[%s11 + $0x8] sm:$0xff]
    %v639 = vld [vmem:[%s11 + $0x10] sm:$0xff]
    %v640 = vld [vmem:[%s11 + $0x18] sm:$0xff]
    %v641 = vld [vmem:[%s11 + $0x20] sm:$0xff]
    %v642 = vld [vmem:[%s11 + $0x28] sm:$0xff]
    %v643 = vld [vmem:[%s11 + $0x30] sm:$0xff]
    %v644 = vld [vmem:[%s11 + $0x38] sm:$0xff]
    %v645 = vld [vmem:[%s11 + $0x40] sm:$0xff]
    %v646 = vld [vmem:[%s11 + $0x48] sm:$0xff]
    %v647 = vld [vmem:[%s11 + $0x50] sm:$0xff]
    %v648 = vld [vmem:[%s11 + $0x58] sm:$0xff]
    %v649 = vld [vmem:[%s11 + $0x60] sm:$0xff]
    %v650 = vld [vmem:[%s11 + $0x68] sm:$0xff]
    %v651 = vld [vmem:[%s11 + $0x70] sm:$0xff]
    %v652 = vld [vmem:[%s11 + $0x78] sm:$0xff]
    %v653 = vld [vmem:[%s12] sm:$0x1]
    %v655 = vperm.slane %v653, 0
    %657 = vmatpush.msra.mxu0 %v652
    %658 = vmatpush.msra.mxu0 %v651
    %659 = vmatpush.msra.mxu0 %v650
    %660 = vmatpush.msra.mxu0 %v649
    %661 = vmatpush.msra.mxu0 %v648
    %662 = vmatpush.msra.mxu0 %v647
    %663 = vmatpush.msra.mxu0 %v646
    %664 = vmatpush.msra.mxu0 %v645
    %665 = vmatpush.msra.mxu0 %v644
    %666 = vmatpush.msra.mxu0 %v643
    %667 = vmatpush.msra.mxu0 %v642
    %668 = vmatpush.msra.mxu0 %v641
    %669 = vmatpush.msra.mxu0 %v640
    %670 = vmatpush.msra.mxu0 %v639
    %671 = vmatpush.msra.mxu0 %v638
    %672 = vmatpush.msra.mxu0 %v637
    %673 = vmatmul.f32.gmra.mxu0 %v635
    %v674 = vpop.f32.mrf.mxu0
    %v675 = vadd.f32 %v655, %v674
    %676 = vmatmul.f32.gmra.mxu0 %v636
    %v677 = vpop.f32.mrf.mxu0
    %v678 = vadd.f32 %v655, %v677
    %679 = vdwg.mxu0
    %v680 = vadd.f32 %v675, %v576
    %v681 = vadd.f32 %v678, %v577
    %v682 = vld [vmem:[%s13] sm:$0x1]
    %v683 = vld [vmem:[%s14] sm:$0x1]
    %v684 = vsel %vm73, %v680, 0.0
    %685 = vadd.xlane.f32.xlu0 %v684
    %v686 = vpop.xlane.xlu0 %685
    %v687 = vsel %vm73, %v681, 0.0
    %688 = vadd.xlane.f32.xlu0 %v687
    %v689 = vpop.xlane.xlu0 %688
    %v690 = vmul.f32 %v686, %v86
    %v691 = vmul.f32 %v689, %v86
    %v692 = vsub.f32 %v680, %v690
    %v693 = vsub.f32 %v681, %v691
    %v694 = vmul.f32 %v692, %v692
    %v695 = vmul.f32 %v693, %v693
    %v696 = vsel %vm73, %v694, 0.0
    %697 = vadd.xlane.f32.xlu0 %v696
    %v698 = vpop.xlane.xlu0 %697
    %v699 = vsel %vm73, %v695, 0.0
    %700 = vadd.xlane.f32.xlu0 %v699
    %v701 = vpop.xlane.xlu0 %700
    %v702 = vmul.f32 %v698, %v86
    %v703 = vmul.f32 %v701, %v86
    %v704 = vadd.f32 %v702, 1e-12
    %v705 = vadd.f32 %v703, 1e-12
    %v706 = vrsqrt.pop %v704
    %v707 = vmul.f32 %v706, %v704
    %v708 = vmul.f32 %v707, %v706
    %v709 = vmul.f32 0.5, %v708
    %v710 = vsub.f32 1.5, %v709
    %v711 = vmul.f32 %v706, %v710
    %vm712 = vweird.f32 %v704
    %vm713 = vweird.f32 %v706
    %vm714 = vmor %vm712, %vm713
    %v715 = vsel %vm714, %v706, %v711
    %v716 = vrsqrt.pop %v705
    %v717 = vmul.f32 %v716, %v705
    %v718 = vmul.f32 %v717, %v716
    %v719 = vmul.f32 0.5, %v718
    %v720 = vsub.f32 1.5, %v719
    %v721 = vmul.f32 %v716, %v720
    %vm722 = vweird.f32 %v705
    %vm723 = vweird.f32 %v716
    %vm724 = vmor %vm722, %vm723
    %v725 = vsel %vm724, %v716, %v721
    %v726 = vmul.f32 %v692, %v715
    %v727 = vmul.f32 %v693, %v725
    %v729 = vperm.slane %v682, 0
    %v731 = vmul.f32 %v726, %v729
    %v732 = vmul.f32 %v727, %v729
    %v734 = vperm.slane %v683, 0
    %v736 = vadd.f32 %v731, %v734
    %v737 = vadd.f32 %v732, %v734
    %s738 = scalar_lea.vmem %s3, 128
    %v739 = vld [vmem:[%s738] sm:$0xff]
    %v740 = vld [vmem:[%s738 + $0x8] sm:$0xff]
    %v741 = vld [vmem:[%s738 + $0x10] sm:$0xff]
    %v742 = vld [vmem:[%s738 + $0x18] sm:$0xff]
    %v743 = vld [vmem:[%s738 + $0x20] sm:$0xff]
    %v744 = vld [vmem:[%s738 + $0x28] sm:$0xff]
    %v745 = vld [vmem:[%s738 + $0x30] sm:$0xff]
    %v746 = vld [vmem:[%s738 + $0x38] sm:$0xff]
    %v747 = vld [vmem:[%s738 + $0x40] sm:$0xff]
    %v748 = vld [vmem:[%s738 + $0x48] sm:$0xff]
    %v749 = vld [vmem:[%s738 + $0x50] sm:$0xff]
    %v750 = vld [vmem:[%s738 + $0x58] sm:$0xff]
    %v751 = vld [vmem:[%s738 + $0x60] sm:$0xff]
    %v752 = vld [vmem:[%s738 + $0x68] sm:$0xff]
    %v753 = vld [vmem:[%s738 + $0x70] sm:$0xff]
    %v754 = vld [vmem:[%s738 + $0x78] sm:$0xff]
    %s755 = scalar_lea.vmem %s4, 2
    %v756 = vld [vmem:[%s755] sm:$0x3]
    %v758 = vperm.slane %v756, 0
    %v759 = vperm.slane %v756, 1
    %v763 = vsel %vm73, %v736, 0
    %v766 = vsel %vm73, %v737, 0
    %768 = vmatpush.msra.mxu0 0.0
    %769 = vmatpush.msra.mxu0 0.0
    %770 = vmatpush.msra.mxu0 0.0
    %771 = vmatpush.msra.mxu0 0.0
    %772 = vmatpush.msra.mxu0 0.0
    %773 = vmatpush.msra.mxu0 0.0
    %774 = vmatpush.msra.mxu0 0.0
    %775 = vmatpush.msra.mxu0 0.0
    %776 = vmatpush.msra.mxu0 %v753
    %777 = vmatpush.msra.mxu0 %v751
    %778 = vmatpush.msra.mxu0 %v749
    %779 = vmatpush.msra.mxu0 %v747
    %780 = vmatpush.msra.mxu0 %v745
    %781 = vmatpush.msra.mxu0 %v743
    %782 = vmatpush.msra.mxu0 %v741
    %783 = vmatpush.msra.mxu0 %v739
    %784 = vmatmul.f32.gmra.mxu0 %v763
    %v785 = vpop.f32.mrf.mxu0
    %v786 = vadd.f32 %v758, %v785
    %787 = vmatmul.f32.gmra.mxu0 %v766
    %v788 = vpop.f32.mrf.mxu0
    %v789 = vadd.f32 %v758, %v788
    %790 = vdwg.mxu0
    %791 = vmatpush.msra.mxu0 0.0
    %792 = vmatpush.msra.mxu0 0.0
    %793 = vmatpush.msra.mxu0 0.0
    %794 = vmatpush.msra.mxu0 0.0
    %795 = vmatpush.msra.mxu0 0.0
    %796 = vmatpush.msra.mxu0 0.0
    %797 = vmatpush.msra.mxu0 0.0
    %798 = vmatpush.msra.mxu0 0.0
    %799 = vmatpush.msra.mxu0 %v754
    %800 = vmatpush.msra.mxu0 %v752
    %801 = vmatpush.msra.mxu0 %v750
    %802 = vmatpush.msra.mxu0 %v748
    %803 = vmatpush.msra.mxu0 %v746
    %804 = vmatpush.msra.mxu0 %v744
    %805 = vmatpush.msra.mxu0 %v742
    %806 = vmatpush.msra.mxu0 %v740
    %807 = vmatmul.f32.gmra.mxu0 %v763
    %v808 = vpop.f32.mrf.mxu0
    %v809 = vadd.f32 %v759, %v808
    %810 = vmatmul.f32.gmra.mxu0 %v766
    %v811 = vpop.f32.mrf.mxu0
    %v812 = vadd.f32 %v759, %v811
    %813 = vdwg.mxu0
    %815 = vrot.lane.b32.xlu0 %v786, 64
    %v816 = vpop.permute.xlu0 %815
    %v817 = vsel %vm212, %v786, 0
    %v819 = vsel %vm212, %v816, 0
    %821 = vmatpush.xpose.msra.mxu0 0.0
    %822 = vmatpush.xpose.msra.mxu0 0.0
    %823 = vmatpush.xpose.msra.mxu0 0.0
    %824 = vmatpush.xpose.msra.mxu0 0.0
    %825 = vmatpush.xpose.msra.mxu0 0.0
    %826 = vmatpush.xpose.msra.mxu0 0.0
    %827 = vmatpush.xpose.msra.mxu0 0.0
    %828 = vmatpush.xpose.msra.mxu0 0.0
    %829 = vmatpush.xpose.msra.mxu0 0.0
    %830 = vmatpush.xpose.msra.mxu0 0.0
    %831 = vmatpush.xpose.msra.mxu0 0.0
    %832 = vmatpush.xpose.msra.mxu0 0.0
    %833 = vmatpush.xpose.msra.mxu0 0.0
    %834 = vmatpush.xpose.msra.mxu0 0.0
    %835 = vmatpush.xpose.msra.mxu0 0.0
    %836 = vmatpush.xpose.msra.mxu0 %v819
    %837 = vmatmul.f32.gmra.mxu0 %v817
    %v838 = vpop.f32.mrf.mxu0
    %v839 = vadd.f32 0.0, %v838
    %840 = vdwg.mxu0
    %842 = vrot.lane.b32.xlu0 %v789, 64
    %v843 = vpop.permute.xlu0 %842
    %v844 = vsel %vm212, %v789, 0
    %v846 = vsel %vm212, %v843, 0
    %848 = vmatpush.xpose.msra.mxu0 0.0
    %849 = vmatpush.xpose.msra.mxu0 0.0
    %850 = vmatpush.xpose.msra.mxu0 0.0
    %851 = vmatpush.xpose.msra.mxu0 0.0
    %852 = vmatpush.xpose.msra.mxu0 0.0
    %853 = vmatpush.xpose.msra.mxu0 0.0
    %854 = vmatpush.xpose.msra.mxu0 0.0
    %855 = vmatpush.xpose.msra.mxu0 0.0
    %856 = vmatpush.xpose.msra.mxu0 0.0
    %857 = vmatpush.xpose.msra.mxu0 0.0
    %858 = vmatpush.xpose.msra.mxu0 0.0
    %859 = vmatpush.xpose.msra.mxu0 0.0
    %860 = vmatpush.xpose.msra.mxu0 0.0
    %861 = vmatpush.xpose.msra.mxu0 0.0
    %862 = vmatpush.xpose.msra.mxu0 0.0
    %863 = vmatpush.xpose.msra.mxu0 %v846
    %864 = vmatmul.f32.gmra.mxu0 %v844
    %v865 = vpop.f32.mrf.mxu0
    %v866 = vadd.f32 0.0, %v865
    %867 = vdwg.mxu0
    %v868 = vmul.f32 %v839, 0.17677669
    %v869 = vmul.f32 %v866, 0.17677669
    %v870 = vsel %vm266, %v868, -inf
    %871 = vmax.xlane.f32.xlu0 %v870
    %v872 = vpop.xlane.xlu0 %871
    %v873 = vsel %vm266, %v869, -inf
    %874 = vmax.xlane.f32.xlu0 %v873
    %v875 = vpop.xlane.xlu0 %874
    %v876 = vsub.f32 %v868, %v872
    %v877 = vsub.f32 %v869, %v875
    %v878 = vmul.f32 %v876, 1.442695
    %v879 = vpow.pop %v878
    %v880 = vmul.f32 %v877, 1.442695
    %v881 = vpow.pop %v880
    %v882 = vsel %vm266, %v879, 0.0
    %883 = vadd.xlane.f32.xlu0 %v882
    %v884 = vpop.xlane.xlu0 %883
    %v885 = vsel %vm266, %v881, 0.0
    %886 = vadd.xlane.f32.xlu0 %v885
    %v887 = vpop.xlane.xlu0 %886
    %v888 = vrcp.pop %v884
    %v889 = vrcp.pop %v887
    %v890 = vmul.f32 %v879, %v888
    %v891 = vmul.f32 %v881, %v889
    %v893 = vsel %vm266, %v890, 0
    %895 = vmatpush.msra.mxu0 0.0
    %896 = vmatpush.msra.mxu0 0.0
    %897 = vmatpush.msra.mxu0 0.0
    %898 = vmatpush.msra.mxu0 0.0
    %899 = vmatpush.msra.mxu0 0.0
    %900 = vmatpush.msra.mxu0 0.0
    %901 = vmatpush.msra.mxu0 0.0
    %902 = vmatpush.msra.mxu0 0.0
    %903 = vmatpush.msra.mxu0 0.0
    %904 = vmatpush.msra.mxu0 0.0
    %905 = vmatpush.msra.mxu0 0.0
    %906 = vmatpush.msra.mxu0 0.0
    %907 = vmatpush.msra.mxu0 0.0
    %908 = vmatpush.msra.mxu0 0.0
    %909 = vmatpush.msra.mxu0 0.0
    %910 = vmatpush.msra.mxu0 %v809
    %911 = vmatmul.f32.gmra.mxu0 %v893
    %v912 = vpop.f32.mrf.mxu0
    %v913 = vadd.f32 0.0, %v912
    %914 = vdwg.mxu0
    %v916 = vsel %vm266, %v891, 0
    %918 = vmatpush.msra.mxu0 0.0
    %919 = vmatpush.msra.mxu0 0.0
    %920 = vmatpush.msra.mxu0 0.0
    %921 = vmatpush.msra.mxu0 0.0
    %922 = vmatpush.msra.mxu0 0.0
    %923 = vmatpush.msra.mxu0 0.0
    %924 = vmatpush.msra.mxu0 0.0
    %925 = vmatpush.msra.mxu0 0.0
    %926 = vmatpush.msra.mxu0 0.0
    %927 = vmatpush.msra.mxu0 0.0
    %928 = vmatpush.msra.mxu0 0.0
    %929 = vmatpush.msra.mxu0 0.0
    %930 = vmatpush.msra.mxu0 0.0
    %931 = vmatpush.msra.mxu0 0.0
    %932 = vmatpush.msra.mxu0 0.0
    %933 = vmatpush.msra.mxu0 %v812
    %934 = vmatmul.f32.gmra.mxu0 %v916
    %v935 = vpop.f32.mrf.mxu0
    %v936 = vadd.f32 0.0, %v935
    %937 = vdwg.mxu0
    %938 = vrot.lane.b32.xlu0 %v786, 96
    %v939 = vpop.permute.xlu0 %938
    %940 = vrot.lane.b32.xlu0 %v786, 32
    %v941 = vpop.permute.xlu0 %940
    %v942 = vsel %vm212, %v939, 0
    %v944 = vsel %vm212, %v941, 0
    %946 = vmatpush.xpose.msra.mxu0 0.0
    %947 = vmatpush.xpose.msra.mxu0 0.0
    %948 = vmatpush.xpose.msra.mxu0 0.0
    %949 = vmatpush.xpose.msra.mxu0 0.0
    %950 = vmatpush.xpose.msra.mxu0 0.0
    %951 = vmatpush.xpose.msra.mxu0 0.0
    %952 = vmatpush.xpose.msra.mxu0 0.0
    %953 = vmatpush.xpose.msra.mxu0 0.0
    %954 = vmatpush.xpose.msra.mxu0 0.0
    %955 = vmatpush.xpose.msra.mxu0 0.0
    %956 = vmatpush.xpose.msra.mxu0 0.0
    %957 = vmatpush.xpose.msra.mxu0 0.0
    %958 = vmatpush.xpose.msra.mxu0 0.0
    %959 = vmatpush.xpose.msra.mxu0 0.0
    %960 = vmatpush.xpose.msra.mxu0 0.0
    %961 = vmatpush.xpose.msra.mxu0 %v944
    %962 = vmatmul.f32.gmra.mxu0 %v942
    %v963 = vpop.f32.mrf.mxu0
    %v964 = vadd.f32 0.0, %v963
    %965 = vdwg.mxu0
    %966 = vrot.lane.b32.xlu0 %v789, 96
    %v967 = vpop.permute.xlu0 %966
    %968 = vrot.lane.b32.xlu0 %v789, 32
    %v969 = vpop.permute.xlu0 %968
    %v970 = vsel %vm212, %v967, 0
    %v972 = vsel %vm212, %v969, 0
    %974 = vmatpush.xpose.msra.mxu0 0.0
    %975 = vmatpush.xpose.msra.mxu0 0.0
    %976 = vmatpush.xpose.msra.mxu0 0.0
    %977 = vmatpush.xpose.msra.mxu0 0.0
    %978 = vmatpush.xpose.msra.mxu0 0.0
    %979 = vmatpush.xpose.msra.mxu0 0.0
    %980 = vmatpush.xpose.msra.mxu0 0.0
    %981 = vmatpush.xpose.msra.mxu0 0.0
    %982 = vmatpush.xpose.msra.mxu0 0.0
    %983 = vmatpush.xpose.msra.mxu0 0.0
    %984 = vmatpush.xpose.msra.mxu0 0.0
    %985 = vmatpush.xpose.msra.mxu0 0.0
    %986 = vmatpush.xpose.msra.mxu0 0.0
    %987 = vmatpush.xpose.msra.mxu0 0.0
    %988 = vmatpush.xpose.msra.mxu0 0.0
    %989 = vmatpush.xpose.msra.mxu0 %v972
    %990 = vmatmul.f32.gmra.mxu0 %v970
    %v991 = vpop.f32.mrf.mxu0
    %v992 = vadd.f32 0.0, %v991
    %993 = vdwg.mxu0
    %v994 = vmul.f32 %v964, 0.17677669
    %v995 = vmul.f32 %v992, 0.17677669
    %v996 = vsel %vm266, %v994, -inf
    %997 = vmax.xlane.f32.xlu0 %v996
    %v998 = vpop.xlane.xlu0 %997
    %v999 = vsel %vm266, %v995, -inf
    %1000 = vmax.xlane.f32.xlu0 %v999
    %v1001 = vpop.xlane.xlu0 %1000
    %v1002 = vsub.f32 %v994, %v998
    %v1003 = vsub.f32 %v995, %v1001
    %v1004 = vmul.f32 %v1002, 1.442695
    %v1005 = vpow.pop %v1004
    %v1006 = vmul.f32 %v1003, 1.442695
    %v1007 = vpow.pop %v1006
    %v1008 = vsel %vm266, %v1005, 0.0
    %1009 = vadd.xlane.f32.xlu0 %v1008
    %v1010 = vpop.xlane.xlu0 %1009
    %v1011 = vsel %vm266, %v1007, 0.0
    %1012 = vadd.xlane.f32.xlu0 %v1011
    %v1013 = vpop.xlane.xlu0 %1012
    %v1014 = vrcp.pop %v1010
    %v1015 = vrcp.pop %v1013
    %v1016 = vmul.f32 %v1005, %v1014
    %v1017 = vmul.f32 %v1007, %v1015
    %1019 = vrot.lane.b32.xlu0 %v809, 96
    %v1020 = vpop.permute.xlu0 %1019
    %v1023 = vsel %vm266, %v1016, 0
    %1025 = vmatpush.msra.mxu0 0.0
    %1026 = vmatpush.msra.mxu0 0.0
    %1027 = vmatpush.msra.mxu0 0.0
    %1028 = vmatpush.msra.mxu0 0.0
    %1029 = vmatpush.msra.mxu0 0.0
    %1030 = vmatpush.msra.mxu0 0.0
    %1031 = vmatpush.msra.mxu0 0.0
    %1032 = vmatpush.msra.mxu0 0.0
    %1033 = vmatpush.msra.mxu0 0.0
    %1034 = vmatpush.msra.mxu0 0.0
    %1035 = vmatpush.msra.mxu0 0.0
    %1036 = vmatpush.msra.mxu0 0.0
    %1037 = vmatpush.msra.mxu0 0.0
    %1038 = vmatpush.msra.mxu0 0.0
    %1039 = vmatpush.msra.mxu0 0.0
    %1040 = vmatpush.msra.mxu0 %v1020
    %1041 = vmatmul.f32.gmra.mxu0 %v1023
    %v1042 = vpop.f32.mrf.mxu0
    %v1043 = vadd.f32 0.0, %v1042
    %1044 = vdwg.mxu0
    %1046 = vrot.lane.b32.xlu0 %v812, 96
    %v1047 = vpop.permute.xlu0 %1046
    %v1050 = vsel %vm266, %v1017, 0
    %1052 = vmatpush.msra.mxu0 0.0
    %1053 = vmatpush.msra.mxu0 0.0
    %1054 = vmatpush.msra.mxu0 0.0
    %1055 = vmatpush.msra.mxu0 0.0
    %1056 = vmatpush.msra.mxu0 0.0
    %1057 = vmatpush.msra.mxu0 0.0
    %1058 = vmatpush.msra.mxu0 0.0
    %1059 = vmatpush.msra.mxu0 0.0
    %1060 = vmatpush.msra.mxu0 0.0
    %1061 = vmatpush.msra.mxu0 0.0
    %1062 = vmatpush.msra.mxu0 0.0
    %1063 = vmatpush.msra.mxu0 0.0
    %1064 = vmatpush.msra.mxu0 0.0
    %1065 = vmatpush.msra.mxu0 0.0
    %1066 = vmatpush.msra.mxu0 0.0
    %1067 = vmatpush.msra.mxu0 %v1047
    %1068 = vmatmul.f32.gmra.mxu0 %v1050
    %v1069 = vpop.f32.mrf.mxu0
    %v1070 = vadd.f32 0.0, %v1069
    %1071 = vdwg.mxu0
    %1074 = vrot.lane.b32.xlu0 %v1043, 32
    %v1075 = vpop.permute.xlu0 %1074
    %1076 = vrot.lane.b32.xlu0 %v1070, 32
    %v1077 = vpop.permute.xlu0 %1076
    %v1080 = vsel %vm212, %v913, %v1075
    %v1081 = vsel %vm212, %v936, %v1077
    %s1082 = scalar_lea.vmem %s5, 64
    %v1083 = vld [vmem:[%s1082] sm:$0xff]
    %v1084 = vld [vmem:[%s1082 + $0x8] sm:$0xff]
    %v1085 = vld [vmem:[%s1082 + $0x10] sm:$0xff]
    %v1086 = vld [vmem:[%s1082 + $0x18] sm:$0xff]
    %v1087 = vld [vmem:[%s1082 + $0x20] sm:$0xff]
    %v1088 = vld [vmem:[%s1082 + $0x28] sm:$0xff]
    %v1089 = vld [vmem:[%s1082 + $0x30] sm:$0xff]
    %v1090 = vld [vmem:[%s1082 + $0x38] sm:$0xff]
    %s1091 = scalar_lea.vmem %s6, 1
    %v1092 = vld [vmem:[%s1091] sm:$0x1]
    %v1094 = vperm.slane %v1092, 0
    %v1097 = vsel %vm73, %v1080, 0
    %v1100 = vsel %vm73, %v1081, 0
    %1102 = vmatpush.msra.mxu0 0.0
    %1103 = vmatpush.msra.mxu0 0.0
    %1104 = vmatpush.msra.mxu0 0.0
    %1105 = vmatpush.msra.mxu0 0.0
    %1106 = vmatpush.msra.mxu0 0.0
    %1107 = vmatpush.msra.mxu0 0.0
    %1108 = vmatpush.msra.mxu0 0.0
    %1109 = vmatpush.msra.mxu0 0.0
    %1110 = vmatpush.msra.mxu0 %v1090
    %1111 = vmatpush.msra.mxu0 %v1089
    %1112 = vmatpush.msra.mxu0 %v1088
    %1113 = vmatpush.msra.mxu0 %v1087
    %1114 = vmatpush.msra.mxu0 %v1086
    %1115 = vmatpush.msra.mxu0 %v1085
    %1116 = vmatpush.msra.mxu0 %v1084
    %1117 = vmatpush.msra.mxu0 %v1083
    %1118 = vmatmul.f32.gmra.mxu0 %v1097
    %v1119 = vpop.f32.mrf.mxu0
    %v1120 = vadd.f32 %v1094, %v1119
    %1121 = vmatmul.f32.gmra.mxu0 %v1100
    %v1122 = vpop.f32.mrf.mxu0
    %v1123 = vadd.f32 %v1094, %v1122
    %1124 = vdwg.mxu0
    %v1125 = vadd.f32 %v1120, %v736
    %v1126 = vadd.f32 %v1123, %v737
    %s1127 = scalar_lea.vmem %s7, 1
    %v1128 = vld [vmem:[%s1127] sm:$0x1]
    %s1129 = scalar_lea.vmem %s8, 1
    %v1130 = vld [vmem:[%s1129] sm:$0x1]
    %v1131 = vsel %vm73, %v1125, 0.0
    %1132 = vadd.xlane.f32.xlu0 %v1131
    %v1133 = vpop.xlane.xlu0 %1132
    %v1134 = vsel %vm73, %v1126, 0.0
    %1135 = vadd.xlane.f32.xlu0 %v1134
    %v1136 = vpop.xlane.xlu0 %1135
    %v1137 = vmul.f32 %v1133, %v86
    %v1138 = vmul.f32 %v1136, %v86
    %v1139 = vsub.f32 %v1125, %v1137
    %v1140 = vsub.f32 %v1126, %v1138
    %v1141 = vmul.f32 %v1139, %v1139
    %v1142 = vmul.f32 %v1140, %v1140
    %v1143 = vsel %vm73, %v1141, 0.0
    %1144 = vadd.xlane.f32.xlu0 %v1143
    %v1145 = vpop.xlane.xlu0 %1144
    %v1146 = vsel %vm73, %v1142, 0.0
    %1147 = vadd.xlane.f32.xlu0 %v1146
    %v1148 = vpop.xlane.xlu0 %1147
    %v1149 = vmul.f32 %v1145, %v86
    %v1150 = vmul.f32 %v1148, %v86
    %v1151 = vadd.f32 %v1149, 1e-12
    %v1152 = vadd.f32 %v1150, 1e-12
    %v1153 = vrsqrt.pop %v1151
    %v1154 = vmul.f32 %v1153, %v1151
    %v1155 = vmul.f32 %v1154, %v1153
    %v1156 = vmul.f32 0.5, %v1155
    %v1157 = vsub.f32 1.5, %v1156
    %v1158 = vmul.f32 %v1153, %v1157
    %vm1159 = vweird.f32 %v1151
    %vm1160 = vweird.f32 %v1153
    %vm1161 = vmor %vm1159, %vm1160
    %v1162 = vsel %vm1161, %v1153, %v1158
    %v1163 = vrsqrt.pop %v1152
    %v1164 = vmul.f32 %v1163, %v1152
    %v1165 = vmul.f32 %v1164, %v1163
    %v1166 = vmul.f32 0.5, %v1165
    %v1167 = vsub.f32 1.5, %v1166
    %v1168 = vmul.f32 %v1163, %v1167
    %vm1169 = vweird.f32 %v1152
    %vm1170 = vweird.f32 %v1163
    %vm1171 = vmor %vm1169, %vm1170
    %v1172 = vsel %vm1171, %v1163, %v1168
    %v1173 = vmul.f32 %v1139, %v1162
    %v1174 = vmul.f32 %v1140, %v1172
    %v1176 = vperm.slane %v1128, 0
    %v1178 = vmul.f32 %v1173, %v1176
    %v1179 = vmul.f32 %v1174, %v1176
    %v1181 = vperm.slane %v1130, 0
    %v1183 = vadd.f32 %v1178, %v1181
    %v1184 = vadd.f32 %v1179, %v1181
    %s1185 = scalar_lea.vmem %s9, 64
    %v1186 = vld [vmem:[%s1185] sm:$0xff]
    %v1187 = vld [vmem:[%s1185 + $0x8] sm:$0xff]
    %v1188 = vld [vmem:[%s1185 + $0x10] sm:$0xff]
    %v1189 = vld [vmem:[%s1185 + $0x18] sm:$0xff]
    %v1190 = vld [vmem:[%s1185 + $0x20] sm:$0xff]
    %v1191 = vld [vmem:[%s1185 + $0x28] sm:$0xff]
    %v1192 = vld [vmem:[%s1185 + $0x30] sm:$0xff]
    %v1193 = vld [vmem:[%s1185 + $0x38] sm:$0xff]
    %s1194 = scalar_lea.vmem %s10, 1
    %v1195 = vld [vmem:[%s1194] sm:$0x1]
    %v1197 = vperm.slane %v1195, 0
    %v1200 = vsel %vm73, %v1183, 0
    %v1203 = vsel %vm73, %v1184, 0
    %1205 = vmatpush.msra.mxu0 0.0
    %1206 = vmatpush.msra.mxu0 0.0
    %1207 = vmatpush.msra.mxu0 0.0
    %1208 = vmatpush.msra.mxu0 0.0
    %1209 = vmatpush.msra.mxu0 0.0
    %1210 = vmatpush.msra.mxu0 0.0
    %1211 = vmatpush.msra.mxu0 0.0
    %1212 = vmatpush.msra.mxu0 0.0
    %1213 = vmatpush.msra.mxu0 %v1193
    %1214 = vmatpush.msra.mxu0 %v1192
    %1215 = vmatpush.msra.mxu0 %v1191
    %1216 = vmatpush.msra.mxu0 %v1190
    %1217 = vmatpush.msra.mxu0 %v1189
    %1218 = vmatpush.msra.mxu0 %v1188
    %1219 = vmatpush.msra.mxu0 %v1187
    %1220 = vmatpush.msra.mxu0 %v1186
    %1221 = vmatmul.f32.gmra.mxu0 %v1200
    %v1222 = vpop.f32.mrf.mxu0
    %v1223 = vadd.f32 %v1197, %v1222
    %1224 = vmatmul.f32.gmra.mxu0 %v1203
    %v1225 = vpop.f32.mrf.mxu0
    %v1226 = vadd.f32 %v1197, %v1225
    %1227 = vdwg.mxu0
    %v1228 = vmul.f32 %v1223, %v1223
    %v1229 = vmul.f32 %v1226, %v1226
    %v1230 = vmul.f32 %v1223, %v1228
    %v1231 = vmul.f32 %v1226, %v1229
    %v1232 = vmul.f32 %v1230, 0.044715
    %v1233 = vmul.f32 %v1231, 0.044715
    %v1234 = vadd.f32 %v1223, %v1232
    %v1235 = vadd.f32 %v1226, %v1233
    %v1236 = vmul.f32 %v1234, 0.7978846
    %v1237 = vmul.f32 %v1235, 0.7978846
    %v1238 = vtanh.pop %v1236
    %v1239 = vtanh.pop %v1237
    %v1240 = vadd.f32 %v1238, 1.0
    %v1241 = vadd.f32 %v1239, 1.0
    %v1242 = vmul.f32 %v1240, 0.5
    %v1243 = vmul.f32 %v1241, 0.5
    %v1244 = vmul.f32 %v1223, %v1242
    %v1245 = vmul.f32 %v1226, %v1243
    %s1246 = scalar_lea.vmem %s11, 128
    %v1247 = vld [vmem:[%s1246] sm:$0xff]
    %v1248 = vld [vmem:[%s1246 + $0x8] sm:$0xff]
    %v1249 = vld [vmem:[%s1246 + $0x10] sm:$0xff]
    %v1250 = vld [vmem:[%s1246 + $0x18] sm:$0xff]
    %v1251 = vld [vmem:[%s1246 + $0x20] sm:$0xff]
    %v1252 = vld [vmem:[%s1246 + $0x28] sm:$0xff]
    %v1253 = vld [vmem:[%s1246 + $0x30] sm:$0xff]
    %v1254 = vld [vmem:[%s1246 + $0x38] sm:$0xff]
    %v1255 = vld [vmem:[%s1246 + $0x40] sm:$0xff]
    %v1256 = vld [vmem:[%s1246 + $0x48] sm:$0xff]
    %v1257 = vld [vmem:[%s1246 + $0x50] sm:$0xff]
    %v1258 = vld [vmem:[%s1246 + $0x58] sm:$0xff]
    %v1259 = vld [vmem:[%s1246 + $0x60] sm:$0xff]
    %v1260 = vld [vmem:[%s1246 + $0x68] sm:$0xff]
    %v1261 = vld [vmem:[%s1246 + $0x70] sm:$0xff]
    %v1262 = vld [vmem:[%s1246 + $0x78] sm:$0xff]
    %s1263 = scalar_lea.vmem %s12, 1
    %v1264 = vld [vmem:[%s1263] sm:$0x1]
    %v1266 = vperm.slane %v1264, 0
    %1268 = vmatpush.msra.mxu0 %v1262
    %1269 = vmatpush.msra.mxu0 %v1261
    %1270 = vmatpush.msra.mxu0 %v1260
    %1271 = vmatpush.msra.mxu0 %v1259
    %1272 = vmatpush.msra.mxu0 %v1258
    %1273 = vmatpush.msra.mxu0 %v1257
    %1274 = vmatpush.msra.mxu0 %v1256
    %1275 = vmatpush.msra.mxu0 %v1255
    %1276 = vmatpush.msra.mxu0 %v1254
    %1277 = vmatpush.msra.mxu0 %v1253
    %1278 = vmatpush.msra.mxu0 %v1252
    %1279 = vmatpush.msra.mxu0 %v1251
    %1280 = vmatpush.msra.mxu0 %v1250
    %1281 = vmatpush.msra.mxu0 %v1249
    %1282 = vmatpush.msra.mxu0 %v1248
    %1283 = vmatpush.msra.mxu0 %v1247
    %1284 = vmatmul.f32.gmra.mxu0 %v1244
    %v1285 = vpop.f32.mrf.mxu0
    %v1286 = vadd.f32 %v1266, %v1285
    %1287 = vmatmul.f32.gmra.mxu0 %v1245
    %v1288 = vpop.f32.mrf.mxu0
    %v1289 = vadd.f32 %v1266, %v1288
    %1290 = vdwg.mxu0
    %v1291 = vadd.f32 %v1286, %v1183
    %v1292 = vadd.f32 %v1289, %v1184
    %s1293 = scalar_lea.vmem %s13, 1
    %v1294 = vld [vmem:[%s1293] sm:$0x1]
    %s1295 = scalar_lea.vmem %s14, 1
    %v1296 = vld [vmem:[%s1295] sm:$0x1]
    %v1297 = vsel %vm73, %v1291, 0.0
    %1298 = vadd.xlane.f32.xlu0 %v1297
    %v1299 = vpop.xlane.xlu0 %1298
    %v1300 = vsel %vm73, %v1292, 0.0
    %1301 = vadd.xlane.f32.xlu0 %v1300
    %v1302 = vpop.xlane.xlu0 %1301
    %v1303 = vmul.f32 %v1299, %v86
    %v1304 = vmul.f32 %v1302, %v86
    %v1305 = vsub.f32 %v1291, %v1303
    %v1306 = vsub.f32 %v1292, %v1304
    %v1307 = vmul.f32 %v1305, %v1305
    %v1308 = vmul.f32 %v1306, %v1306
    %v1309 = vsel %vm73, %v1307, 0.0
    %1310 = vadd.xlane.f32.xlu0 %v1309
    %v1311 = vpop.xlane.xlu0 %1310
    %v1312 = vsel %vm73, %v1308, 0.0
    %1313 = vadd.xlane.f32.xlu0 %v1312
    %v1314 = vpop.xlane.xlu0 %1313
    %v1315 = vmul.f32 %v1311, %v86
    %v1316 = vmul.f32 %v1314, %v86
    %v1317 = vadd.f32 %v1315, 1e-12
    %v1318 = vadd.f32 %v1316, 1e-12
    %v1319 = vrsqrt.pop %v1317
    %v1320 = vmul.f32 %v1319, %v1317
    %v1321 = vmul.f32 %v1320, %v1319
    %v1322 = vmul.f32 0.5, %v1321
    %v1323 = vsub.f32 1.5, %v1322
    %v1324 = vmul.f32 %v1319, %v1323
    %vm1325 = vweird.f32 %v1317
    %vm1326 = vweird.f32 %v1319
    %vm1327 = vmor %vm1325, %vm1326
    %v1328 = vsel %vm1327, %v1319, %v1324
    %v1329 = vrsqrt.pop %v1318
    %v1330 = vmul.f32 %v1329, %v1318
    %v1331 = vmul.f32 %v1330, %v1329
    %v1332 = vmul.f32 0.5, %v1331
    %v1333 = vsub.f32 1.5, %v1332
    %v1334 = vmul.f32 %v1329, %v1333
    %vm1335 = vweird.f32 %v1318
    %vm1336 = vweird.f32 %v1329
    %vm1337 = vmor %vm1335, %vm1336
    %v1338 = vsel %vm1337, %v1329, %v1334
    %v1339 = vmul.f32 %v1305, %v1328
    %v1340 = vmul.f32 %v1306, %v1338
    %v1342 = vperm.slane %v1294, 0
    %v1344 = vmul.f32 %v1339, %v1342
    %v1345 = vmul.f32 %v1340, %v1342
    %v1347 = vperm.slane %v1296, 0
    %v1349 = vadd.f32 %v1344, %v1347
    %v1350 = vadd.f32 %v1345, %v1347
    %v1351 = vld [vmem:[%s15] sm:$0xff]
    %v1352 = vld [vmem:[%s15 + $0x8] sm:$0xff]
    %v1353 = vld [vmem:[%s15 + $0x10] sm:$0xff]
    %v1354 = vld [vmem:[%s15 + $0x18] sm:$0xff]
    %v1355 = vld [vmem:[%s15 + $0x20] sm:$0xff]
    %v1356 = vld [vmem:[%s15 + $0x28] sm:$0xff]
    %v1357 = vld [vmem:[%s15 + $0x30] sm:$0xff]
    %v1358 = vld [vmem:[%s15 + $0x38] sm:$0xff]
    %v1359 = vld [vmem:[%s16] sm:$0x1]
    %v1361 = vperm.slane %v1359, 0
    %v1365 = vrot.slane %v1350, 7
    %vm1366 = vcmask 1041409
    %v1367 = vsel %vm1366, %v1365, %v1349
    %v1368 = vsel %vm73, %v1367, 0
    %1370 = vmatpush.msra.mxu0 0.0
    %1371 = vmatpush.msra.mxu0 0.0
    %1372 = vmatpush.msra.mxu0 0.0
    %1373 = vmatpush.msra.mxu0 0.0
    %1374 = vmatpush.msra.mxu0 0.0
    %1375 = vmatpush.msra.mxu0 0.0
    %1376 = vmatpush.msra.mxu0 0.0
    %1377 = vmatpush.msra.mxu0 0.0
    %1378 = vmatpush.msra.mxu0 %v1358
    %1379 = vmatpush.msra.mxu0 %v1357
    %1380 = vmatpush.msra.mxu0 %v1356
    %1381 = vmatpush.msra.mxu0 %v1355
    %1382 = vmatpush.msra.mxu0 %v1354
    %1383 = vmatpush.msra.mxu0 %v1353
    %1384 = vmatpush.msra.mxu0 %v1352
    %1385 = vmatpush.msra.mxu0 %v1351
    %1386 = vmatmul.f32.gmra.mxu0 %v1368
    %v1387 = vpop.f32.mrf.mxu0
    %v1388 = vadd.f32 %v1361, %v1387
    %1389 = vdwg.mxu0
    %v1390 = vtanh.pop %v1388
    %v1391 = vld [vmem:[%s17] sm:$0xff]
    %v1392 = vld [vmem:[%s17 + $0x8] sm:$0xff]
    %v1393 = vld [vmem:[%s17 + $0x10] sm:$0xff]
    %v1394 = vld [vmem:[%s17 + $0x18] sm:$0xff]
    %v1395 = vld [vmem:[%s17 + $0x20] sm:$0xff]
    %v1396 = vld [vmem:[%s17 + $0x28] sm:$0xff]
    %v1397 = vld [vmem:[%s17 + $0x30] sm:$0xff]
    %v1398 = vld [vmem:[%s17 + $0x38] sm:$0xff]
    %v1399 = vld [vmem:[%s18] sm:$0x1]
    %v1401 = vperm.slane %v1399, 0
    %v1404 = vsel %vm73, %v1390, 0
    %1406 = vmatpush.msra.mxu0 0.0
    %1407 = vmatpush.msra.mxu0 0.0
    %1408 = vmatpush.msra.mxu0 0.0
    %1409 = vmatpush.msra.mxu0 0.0
    %1410 = vmatpush.msra.mxu0 0.0
    %1411 = vmatpush.msra.mxu0 0.0
    %1412 = vmatpush.msra.mxu0 0.0
    %1413 = vmatpush.msra.mxu0 0.0
    %1414 = vmatpush.msra.mxu0 %v1398
    %1415 = vmatpush.msra.mxu0 %v1397
    %1416 = vmatpush.msra.mxu0 %v1396
    %1417 = vmatpush.msra.mxu0 %v1395
    %1418 = vmatpush.msra.mxu0 %v1394
    %1419 = vmatpush.msra.mxu0 %v1393
    %1420 = vmatpush.msra.mxu0 %v1392
    %1421 = vmatpush.msra.mxu0 %v1391
    %1422 = vmatmul.f32.gmra.mxu0 %v1404
    %v1423 = vpop.f32.mrf.mxu0
    %v1424 = vadd.f32 %v1401, %v1423
    %1425 = vdwg.mxu0
    %v1426 = vmax.f32 %v1424, 0.0
    %v1427 = vld [vmem:[%s19] sm:$0xff]
    %v1428 = vld [vmem:[%s19 + $0x8] sm:$0xff]
    %v1429 = vld [vmem:[%s19 + $0x10] sm:$0xff]
    %v1430 = vld [vmem:[%s19 + $0x18] sm:$0xff]
    %v1431 = vld [vmem:[%s20] sm:$0x1]
    %v1433 = vperm.slane %v1431, 0
    %v1436 = vsel %vm212, %v1426, 0
    %1438 = vmatpush.msra.mxu0 0.0
    %1439 = vmatpush.msra.mxu0 0.0
    %1440 = vmatpush.msra.mxu0 0.0
    %1441 = vmatpush.msra.mxu0 0.0
    %1442 = vmatpush.msra.mxu0 0.0
    %1443 = vmatpush.msra.mxu0 0.0
    %1444 = vmatpush.msra.mxu0 0.0
    %1445 = vmatpush.msra.mxu0 0.0
    %1446 = vmatpush.msra.mxu0 0.0
    %1447 = vmatpush.msra.mxu0 0.0
    %1448 = vmatpush.msra.mxu0 0.0
    %1449 = vmatpush.msra.mxu0 0.0
    %1450 = vmatpush.msra.mxu0 %v1430
    %1451 = vmatpush.msra.mxu0 %v1429
    %1452 = vmatpush.msra.mxu0 %v1428
    %1453 = vmatpush.msra.mxu0 %v1427
    %1454 = vmatmul.f32.gmra.mxu0 %v1436
    %v1455 = vpop.f32.mrf.mxu0
    %v1456 = vadd.f32 %v1433, %v1455
    %1457 = vdwg.mxu0
    %1458 = vst [vmem:[#allocation2] sm:$0x3] %v1456
    // Predicated region
    $region86: #{task_prediction_type.1} parent=1 // pred_check
      _
    $region87: #{task_prediction_type.1} parent=1 // pred_check_branch
      %1460 = sbr.rel (0) target = $region89
    $region88: #{task_prediction_type.1} parent=1 // pred_region
      %1462 = vsyncadd [#allocation3], 0
      %s1464 = sshll.u32 [#allocation2], 4
      %s1465 = int_to_ptr.vmem [resolvable:$true] %s1464
      %s1466 = sshll.u32 %s21, 4
      %s1467 = int_to_ptr.hbm [resolvable:$true] %s1466
      %1469 = dma.vmem_to_hbm [thread:$0]  %s1465, 32, %s1467, [#allocation3]
    $region89: #{task_prediction_type.1} parent=1 // pred_fallthru
      _
    // Predicated region
    $region90: #{task_prediction_type.1} parent=1 // pred_check
      _
    $region91: #{task_prediction_type.1} parent=1 // pred_check_branch
      %1471 = sbr.rel (0) target = $region93
    $region92: #{task_prediction_type.1} parent=1 // pred_region
      %1473 = dma.done [#allocation3], 32
    $region93: #{task_prediction_type.1} parent=1 // pred_fallthru
      _
    %1474 = vsyncpa [#allocation3], 1

</llo_original>
